<compile_context>
chip_gen: v6e
topology: v6e:2x2x1
jax: 0.10.0
libtpu: 0.0.40
codegen_flags: <defaults>
</compile_context>

<pallas_src>
import jax
import jax.numpy as jnp
from jax.experimental import pallas as pl
from jax.experimental.pallas import tpu as pltpu

# ---- Config (mirrors the PyTorch Config) ------------------------------------
MAX_LENGTH = 50          # Config.max_length
NUM_CLASSES = 6
VOCAB_SIZE = 100         # input_size (synthetic)
HIDDEN_SIZE = 32         # hidden_size (synthetic)
BATCH = 4                # small example batch
VPAD = 128               # vocab padded to one full lane-tile per position


# ---- Fused Pallas kernel -----------------------------------------------------
def _fused_logreg_kernel(ids_ref, p_ref, b_ref, o_ref, oh_ref):
    """Fused embedding-lookup + flatten + linear.

    ids_ref: [B, L]  int32  token ids (batch-major, straight from the caller).
    p_ref:   [N, K]  bf16   folded weight, K = L*VPAD lane-dense:
                            P[n, l*VPAD + v] = E[v, :] . W[n, l*H:(l+1)*H].
    b_ref:   [1, N]  f32    bias.
    o_ref:   [B, N]  f32    logits.
    oh_ref:  [B, K]  bf16   VMEM scratch for the flattened one-hot.
    """
    B, L = ids_ref.shape
    K = p_ref.shape[1]
    vpad = K // L

    ids = ids_ref[...]                                              # [B, L] int32
    v_iota = jax.lax.broadcasted_iota(jnp.int32, (B, vpad), 1)      # hoisted once

    # Build the flattened one-hot directly in [B, L*vpad] orientation:
    # position l owns lanes [l*vpad, (l+1)*vpad).  Each iteration is a lane
    # broadcast + compare + one lane-tile-aligned bf16 store; no reshape or
    # cross-tile relayout is ever needed.
    # NOTE: out-of-range ids (<0 or >= VOCAB_SIZE) silently produce an all-zero
    # row (zero embedding contribution), whereas torch.nn.Embedding raises.
    for l in range(L):
        oh_ref[:, l * vpad:(l + 1) * vpad] = (
            ids[:, l:l + 1] == v_iota).astype(jnp.bfloat16)

    # Single deep-K MXU contraction (A . B^T), f32 accumulation:
    #   logits[b, n] = sum_k onehot[b, k] * P[n, k]
    y = jax.lax.dot_general(
        oh_ref[...], p_ref[...],
        dimension_numbers=(((1,), (1,)), ((), ())),
        preferred_element_type=jnp.float32)                          # [B, N]

    o_ref[...] = y + b_ref[...]


# ---- Model: parameters + forward ---------------------------------------------
def init_params(key, vocab_size, hidden_size, max_length, num_classes):
    k_emb, k_w, k_b = jax.random.split(key, 3)
    # nn.Embedding default init: N(0, 1)
    embedding = jax.random.normal(k_emb, (vocab_size, hidden_size), jnp.float32)
    # nn.Linear default init: U(-1/sqrt(fan_in), 1/sqrt(fan_in))
    fan_in = hidden_size * max_length
    bound = 1.0 / (fan_in ** 0.5)
    w = jax.random.uniform(k_w, (num_classes, fan_in), jnp.float32, -bound, bound)
    b = jax.random.uniform(k_b, (num_classes,), jnp.float32, -bound, bound)
    return {"embedding": embedding, "w": w, "b": b}


def prepare_kernel_params(params, max_length, hidden_size, vpad=VPAD):
    """One-time (init-time) weight folding + layout — NOT done per forward call.

    P[n, l*vpad + v] = E[v, :] . W[n, l*H:(l+1)*H]   so that
    logits[b, n] = bias[n] + sum_l P[n, l*vpad + ids[b, l]],
    which the kernel evaluates as a single one-hot bf16 MXU matmul
    (mathematically identical to embed -> flatten -> linear up to the bf16
    rounding of P and f32 reassociation).
    """
    e = params["embedding"]                                    # [V, H] f32
    vocab = e.shape[0]
    n_cls = params["w"].shape[0]
    w3 = params["w"].reshape(n_cls, max_length, hidden_size)   # [N, L, H]
    p = jnp.einsum("nlh,vh->nlv", w3, e,
                   precision=jax.lax.Precision.HIGHEST)        # [N, L, V]
    p = jnp.pad(p, ((0, 0), (0, 0), (0, vpad - vocab)))        # [N, L, vpad]
    p = p.reshape(n_cls, max_length * vpad)                    # [N, K] lane-dense
    return {"p": p.astype(jnp.bfloat16),
            "b2": params["b"].reshape(1, n_cls).astype(jnp.float32)}


def logistic_regression_forward(kernel_params, abstract):
    """abstract: [B, MAX_LENGTH] int32 token ids -> [B, 6] f32 logits."""
    p = kernel_params["p"]            # [N, K] bf16
    b2 = kernel_params["b2"]          # [1, N] f32
    n_cls, k = p.shape
    batch = abstract.shape[0]

    vmem = pl.BlockSpec(memory_space=pltpu.MemorySpace.VMEM)
    return pl.pallas_call(
        _fused_logreg_kernel,
        out_shape=jax.ShapeDtypeStruct((batch, n_cls), jnp.float32),
        in_specs=[vmem, vmem, vmem],
        out_specs=vmem,
        scratch_shapes=[pltpu.VMEM((batch, k), jnp.bfloat16)],
    )(abstract.astype(jnp.int32), p, b2)


# ---- Pure-JAX references ------------------------------------------------------
def reference_forward(params, abstract):
    """Original graph in f32: gather -> flatten -> linear."""
    emb = jnp.take(params["embedding"], abstract, axis=0)        # [B, L, H]
    flat = emb.reshape(emb.shape[0], -1)                         # [B, L*H]
    return jnp.dot(flat, params["w"].T,
                   precision=jax.lax.Precision.HIGHEST) + params["b"]


def reference_forward_folded(kernel_params, abstract, max_length, vpad=VPAD):
    """Exact expectation of the kernel math (same bf16 folded weights)."""
    p = kernel_params["p"].astype(jnp.float32)                   # [N, K]
    keys = jnp.arange(max_length)[None, :] * vpad + abstract     # [B, L]
    gathered = jnp.take(p, keys, axis=1)                         # [N, B, L]
    return jnp.sum(gathered, axis=2).T + kernel_params["b2"]     # [B, N]


if __name__ == "__main__":
    key = jax.random.PRNGKey(0)
    k_params, k_tokens = jax.random.split(key)

    params = init_params(k_params, VOCAB_SIZE, HIDDEN_SIZE, MAX_LENGTH, NUM_CLASSES)
    kernel_params = prepare_kernel_params(params, MAX_LENGTH, HIDDEN_SIZE)
    abstract = jax.random.randint(
        k_tokens, (BATCH, MAX_LENGTH), 0, VOCAB_SIZE, dtype=jnp.int32)

    forward = jax.jit(logistic_regression_forward)
    out = jax.block_until_ready(forward(kernel_params, abstract))

    assert out.shape == (BATCH, NUM_CLASSES)

    # Tight check of the kernel mechanics: same bf16 folded weights, only MXU
    # accumulation-order differences remain.
    ref_folded = reference_forward_folded(kernel_params, abstract, MAX_LENGTH)
    assert jnp.allclose(out, ref_folded, atol=1e-4, rtol=1e-4), "kernel-math mismatch"

    # End-to-end check vs the original f32 embed->flatten->linear graph.  The
    # folded weights are stored in bf16 (entries ~O(0.1), ~0.4% rel error), so
    # allow ~1e-2 slack on logits of magnitude ~0.5.
    ref_f32 = reference_forward(params, abstract)
    assert jnp.allclose(out, ref_f32, atol=1e-2, rtol=1e-2), "mismatch vs f32 reference"

    print("KERNEL_OK")
</pallas_src>

<mosaic_0001>
module attributes {stable_mosaic.version = 11 : i64} {
  func.func @_fused_logreg_kernel(%arg0: memref<4x50xi32, #tpu.memory_space<vmem>>, %arg1: memref<6x6400xbf16, #tpu.memory_space<vmem>>, %arg2: memref<1x6xf32, #tpu.memory_space<vmem>>, %arg3: memref<4x6xf32, #tpu.memory_space<vmem>>, %arg4: memref<4x6400xbf16, #tpu.memory_space<vmem>>) attributes {dimension_semantics = [], scalar_prefetch = 0 : i64, scratch_operands = 1 : i64, tpu.core_type = #tpu.core_type<tc>} {
    %c0 = arith.constant 0 : index
    %c0_0 = arith.constant 0 : index
    %0 = vector.load %arg0[%c0, %c0_0] : memref<4x50xi32, #tpu.memory_space<vmem>>, vector<4x50xi32>
    %1 = tpu.iota {dimensions = array<i32: 1>} : vector<4x128xi32>
    %2 = vector.extract_strided_slice %0 {offsets = [0, 0], sizes = [4, 1], strides = [1, 1]} : vector<4x50xi32> to vector<4x1xi32>
    %3 = vector.broadcast %2 : vector<4x1xi32> to vector<4x128xi32>
    %4 = arith.cmpi eq, %3, %1 : vector<4x128xi32>
    %5 = arith.extui %4 : vector<4x128xi1> to vector<4x128xi32>
    %6 = arith.sitofp %5 : vector<4x128xi32> to vector<4x128xf32>
    %7 = arith.truncf %6 : vector<4x128xf32> to vector<4x128xbf16>
    %c0_1 = arith.constant 0 : index
    %c0_2 = arith.constant 0 : index
    %8 = vector.load %arg4[%c0_1, %c0_2] : memref<4x6400xbf16, #tpu.memory_space<vmem>>, vector<4x128xbf16>
    tpu.vector_store %arg4[%c0_1, %c0_2], %7 {strides = array<i32>} : memref<4x6400xbf16, #tpu.memory_space<vmem>>, vector<4x128xbf16>,
    %9 = vector.extract_strided_slice %0 {offsets = [0, 1], sizes = [4, 1], strides = [1, 1]} : vector<4x50xi32> to vector<4x1xi32>
    %10 = vector.broadcast %9 : vector<4x1xi32> to vector<4x128xi32>
    %11 = arith.cmpi eq, %10, %1 : vector<4x128xi32>
    %12 = arith.extui %11 : vector<4x128xi1> to vector<4x128xi32>
    %13 = arith.sitofp %12 : vector<4x128xi32> to vector<4x128xf32>
    %14 = arith.truncf %13 : vector<4x128xf32> to vector<4x128xbf16>
    %c0_3 = arith.constant 0 : index
    %c128 = arith.constant 128 : index
    %15 = vector.load %arg4[%c0_3, %c128] : memref<4x6400xbf16, #tpu.memory_space<vmem>>, vector<4x128xbf16>
    tpu.vector_store %arg4[%c0_3, %c128], %14 {strides = array<i32>} : memref<4x6400xbf16, #tpu.memory_space<vmem>>, vector<4x128xbf16>,
    %16 = vector.extract_strided_slice %0 {offsets = [0, 2], sizes = [4, 1], strides = [1, 1]} : vector<4x50xi32> to vector<4x1xi32>
    %17 = vector.broadcast %16 : vector<4x1xi32> to vector<4x128xi32>
    %18 = arith.cmpi eq, %17, %1 : vector<4x128xi32>
    %19 = arith.extui %18 : vector<4x128xi1> to vector<4x128xi32>
    %20 = arith.sitofp %19 : vector<4x128xi32> to vector<4x128xf32>
    %21 = arith.truncf %20 : vector<4x128xf32> to vector<4x128xbf16>
    %c0_4 = arith.constant 0 : index
    %c256 = arith.constant 256 : index
    %22 = vector.load %arg4[%c0_4, %c256] : memref<4x6400xbf16, #tpu.memory_space<vmem>>, vector<4x128xbf16>
    tpu.vector_store %arg4[%c0_4, %c256], %21 {strides = array<i32>} : memref<4x6400xbf16, #tpu.memory_space<vmem>>, vector<4x128xbf16>,
    %23 = vector.extract_strided_slice %0 {offsets = [0, 3], sizes = [4, 1], strides = [1, 1]} : vector<4x50xi32> to vector<4x1xi32>
    %24 = vector.broadcast %23 : vector<4x1xi32> to vector<4x128xi32>
    %25 = arith.cmpi eq, %24, %1 : vector<4x128xi32>
    %26 = arith.extui %25 : vector<4x128xi1> to vector<4x128xi32>
    %27 = arith.sitofp %26 : vector<4x128xi32> to vector<4x128xf32>
    %28 = arith.truncf %27 : vector<4x128xf32> to vector<4x128xbf16>
    %c0_5 = arith.constant 0 : index
    %c384 = arith.constant 384 : index
    %29 = vector.load %arg4[%c0_5, %c384] : memref<4x6400xbf16, #tpu.memory_space<vmem>>, vector<4x128xbf16>
    tpu.vector_store %arg4[%c0_5, %c384], %28 {strides = array<i32>} : memref<4x6400xbf16, #tpu.memory_space<vmem>>, vector<4x128xbf16>,
    %30 = vector.extract_strided_slice %0 {offsets = [0, 4], sizes = [4, 1], strides = [1, 1]} : vector<4x50xi32> to vector<4x1xi32>
    %31 = vector.broadcast %30 : vector<4x1xi32> to vector<4x128xi32>
    %32 = arith.cmpi eq, %31, %1 : vector<4x128xi32>
    %33 = arith.extui %32 : vector<4x128xi1> to vector<4x128xi32>
    %34 = arith.sitofp %33 : vector<4x128xi32> to vector<4x128xf32>
    %35 = arith.truncf %34 : vector<4x128xf32> to vector<4x128xbf16>
    %c0_6 = arith.constant 0 : index
    %c512 = arith.constant 512 : index
    %36 = vector.load %arg4[%c0_6, %c512] : memref<4x6400xbf16, #tpu.memory_space<vmem>>, vector<4x128xbf16>
    tpu.vector_store %arg4[%c0_6, %c512], %35 {strides = array<i32>} : memref<4x6400xbf16, #tpu.memory_space<vmem>>, vector<4x128xbf16>,
    %37 = vector.extract_strided_slice %0 {offsets = [0, 5], sizes = [4, 1], strides = [1, 1]} : vector<4x50xi32> to vector<4x1xi32>
    %38 = vector.broadcast %37 : vector<4x1xi32> to vector<4x128xi32>
    %39 = arith.cmpi eq, %38, %1 : vector<4x128xi32>
    %40 = arith.extui %39 : vector<4x128xi1> to vector<4x128xi32>
    %41 = arith.sitofp %40 : vector<4x128xi32> to vector<4x128xf32>
    %42 = arith.truncf %41 : vector<4x128xf32> to vector<4x128xbf16>
    %c0_7 = arith.constant 0 : index
    %c640 = arith.constant 640 : index
    %43 = vector.load %arg4[%c0_7, %c640] : memref<4x6400xbf16, #tpu.memory_space<vmem>>, vector<4x128xbf16>
    tpu.vector_store %arg4[%c0_7, %c640], %42 {strides = array<i32>} : memref<4x6400xbf16, #tpu.memory_space<vmem>>, vector<4x128xbf16>,
    %44 = vector.extract_strided_slice %0 {offsets = [0, 6], sizes = [4, 1], strides = [1, 1]} : vector<4x50xi32> to vector<4x1xi32>
    %45 = vector.broadcast %44 : vector<4x1xi32> to vector<4x128xi32>
    %46 = arith.cmpi eq, %45, %1 : vector<4x128xi32>
    %47 = arith.extui %46 : vector<4x128xi1> to vector<4x128xi32>
    %48 = arith.sitofp %47 : vector<4x128xi32> to vector<4x128xf32>
    %49 = arith.truncf %48 : vector<4x128xf32> to vector<4x128xbf16>
    %c0_8 = arith.constant 0 : index
    %c768 = arith.constant 768 : index
    %50 = vector.load %arg4[%c0_8, %c768] : memref<4x6400xbf16, #tpu.memory_space<vmem>>, vector<4x128xbf16>
    tpu.vector_store %arg4[%c0_8, %c768], %49 {strides = array<i32>} : memref<4x6400xbf16, #tpu.memory_space<vmem>>, vector<4x128xbf16>,
    %51 = vector.extract_strided_slice %0 {offsets = [0, 7], sizes = [4, 1], strides = [1, 1]} : vector<4x50xi32> to vector<4x1xi32>
    %52 = vector.broadcast %51 : vector<4x1xi32> to vector<4x128xi32>
    %53 = arith.cmpi eq, %52, %1 : vector<4x128xi32>
    %54 = arith.extui %53 : vector<4x128xi1> to vector<4x128xi32>
    %55 = arith.sitofp %54 : vector<4x128xi32> to vector<4x128xf32>
    %56 = arith.truncf %55 : vector<4x128xf32> to vector<4x128xbf16>
    %c0_9 = arith.constant 0 : index
    %c896 = arith.constant 896 : index
    %57 = vector.load %arg4[%c0_9, %c896] : memref<4x6400xbf16, #tpu.memory_space<vmem>>, vector<4x128xbf16>
    tpu.vector_store %arg4[%c0_9, %c896], %56 {strides = array<i32>} : memref<4x6400xbf16, #tpu.memory_space<vmem>>, vector<4x128xbf16>,
    %58 = vector.extract_strided_slice %0 {offsets = [0, 8], sizes = [4, 1], strides = [1, 1]} : vector<4x50xi32> to vector<4x1xi32>
    %59 = vector.broadcast %58 : vector<4x1xi32> to vector<4x128xi32>
    %60 = arith.cmpi eq, %59, %1 : vector<4x128xi32>
    %61 = arith.extui %60 : vector<4x128xi1> to vector<4x128xi32>
    %62 = arith.sitofp %61 : vector<4x128xi32> to vector<4x128xf32>
    %63 = arith.truncf %62 : vector<4x128xf32> to vector<4x128xbf16>
    %c0_10 = arith.constant 0 : index
    %c1024 = arith.constant 1024 : index
    %64 = vector.load %arg4[%c0_10, %c1024] : memref<4x6400xbf16, #tpu.memory_space<vmem>>, vector<4x128xbf16>
    tpu.vector_store %arg4[%c0_10, %c1024], %63 {strides = array<i32>} : memref<4x6400xbf16, #tpu.memory_space<vmem>>, vector<4x128xbf16>,
    %65 = vector.extract_strided_slice %0 {offsets = [0, 9], sizes = [4, 1], strides = [1, 1]} : vector<4x50xi32> to vector<4x1xi32>
    %66 = vector.broadcast %65 : vector<4x1xi32> to vector<4x128xi32>
    %67 = arith.cmpi eq, %66, %1 : vector<4x128xi32>
    %68 = arith.extui %67 : vector<4x128xi1> to vector<4x128xi32>
    %69 = arith.sitofp %68 : vector<4x128xi32> to vector<4x128xf32>
    %70 = arith.truncf %69 : vector<4x128xf32> to vector<4x128xbf16>
    %c0_11 = arith.constant 0 : index
    %c1152 = arith.constant 1152 : index
    %71 = vector.load %arg4[%c0_11, %c1152] : memref<4x6400xbf16, #tpu.memory_space<vmem>>, vector<4x128xbf16>
    tpu.vector_store %arg4[%c0_11, %c1152], %70 {strides = array<i32>} : memref<4x6400xbf16, #tpu.memory_space<vmem>>, vector<4x128xbf16>,
    %72 = vector.extract_strided_slice %0 {offsets = [0, 10], sizes = [4, 1], strides = [1, 1]} : vector<4x50xi32> to vector<4x1xi32>
    %73 = vector.broadcast %72 : vector<4x1xi32> to vector<4x128xi32>
    %74 = arith.cmpi eq, %73, %1 : vector<4x128xi32>
    %75 = arith.extui %74 : vector<4x128xi1> to vector<4x128xi32>
    %76 = arith.sitofp %75 : vector<4x128xi32> to vector<4x128xf32>
    %77 = arith.truncf %76 : vector<4x128xf32> to vector<4x128xbf16>
    %c0_12 = arith.constant 0 : index
    %c1280 = arith.constant 1280 : index
    %78 = vector.load %arg4[%c0_12, %c1280] : memref<4x6400xbf16, #tpu.memory_space<vmem>>, vector<4x128xbf16>
    tpu.vector_store %arg4[%c0_12, %c1280], %77 {strides = array<i32>} : memref<4x6400xbf16, #tpu.memory_space<vmem>>, vector<4x128xbf16>,
    %79 = vector.extract_strided_slice %0 {offsets = [0, 11], sizes = [4, 1], strides = [1, 1]} : vector<4x50xi32> to vector<4x1xi32>
    %80 = vector.broadcast %79 : vector<4x1xi32> to vector<4x128xi32>
    %81 = arith.cmpi eq, %80, %1 : vector<4x128xi32>
    %82 = arith.extui %81 : vector<4x128xi1> to vector<4x128xi32>
    %83 = arith.sitofp %82 : vector<4x128xi32> to vector<4x128xf32>
    %84 = arith.truncf %83 : vector<4x128xf32> to vector<4x128xbf16>
    %c0_13 = arith.constant 0 : index
    %c1408 = arith.constant 1408 : index
    %85 = vector.load %arg4[%c0_13, %c1408] : memref<4x6400xbf16, #tpu.memory_space<vmem>>, vector<4x128xbf16>
    tpu.vector_store %arg4[%c0_13, %c1408], %84 {strides = array<i32>} : memref<4x6400xbf16, #tpu.memory_space<vmem>>, vector<4x128xbf16>,
    %86 = vector.extract_strided_slice %0 {offsets = [0, 12], sizes = [4, 1], strides = [1, 1]} : vector<4x50xi32> to vector<4x1xi32>
    %87 = vector.broadcast %86 : vector<4x1xi32> to vector<4x128xi32>
    %88 = arith.cmpi eq, %87, %1 : vector<4x128xi32>
    %89 = arith.extui %88 : vector<4x128xi1> to vector<4x128xi32>
    %90 = arith.sitofp %89 : vector<4x128xi32> to vector<4x128xf32>
    %91 = arith.truncf %90 : vector<4x128xf32> to vector<4x128xbf16>
    %c0_14 = arith.constant 0 : index
    %c1536 = arith.constant 1536 : index
    %92 = vector.load %arg4[%c0_14, %c1536] : memref<4x6400xbf16, #tpu.memory_space<vmem>>, vector<4x128xbf16>
    tpu.vector_store %arg4[%c0_14, %c1536], %91 {strides = array<i32>} : memref<4x6400xbf16, #tpu.memory_space<vmem>>, vector<4x128xbf16>,
    %93 = vector.extract_strided_slice %0 {offsets = [0, 13], sizes = [4, 1], strides = [1, 1]} : vector<4x50xi32> to vector<4x1xi32>
    %94 = vector.broadcast %93 : vector<4x1xi32> to vector<4x128xi32>
    %95 = arith.cmpi eq, %94, %1 : vector<4x128xi32>
    %96 = arith.extui %95 : vector<4x128xi1> to vector<4x128xi32>
    %97 = arith.sitofp %96 : vector<4x128xi32> to vector<4x128xf32>
    %98 = arith.truncf %97 : vector<4x128xf32> to vector<4x128xbf16>
    %c0_15 = arith.constant 0 : index
    %c1664 = arith.constant 1664 : index
    %99 = vector.load %arg4[%c0_15, %c1664] : memref<4x6400xbf16, #tpu.memory_space<vmem>>, vector<4x128xbf16>
    tpu.vector_store %arg4[%c0_15, %c1664], %98 {strides = array<i32>} : memref<4x6400xbf16, #tpu.memory_space<vmem>>, vector<4x128xbf16>,
    %100 = vector.extract_strided_slice %0 {offsets = [0, 14], sizes = [4, 1], strides = [1, 1]} : vector<4x50xi32> to vector<4x1xi32>
    %101 = vector.broadcast %100 : vector<4x1xi32> to vector<4x128xi32>
    %102 = arith.cmpi eq, %101, %1 : vector<4x128xi32>
    %103 = arith.extui %102 : vector<4x128xi1> to vector<4x128xi32>
    %104 = arith.sitofp %103 : vector<4x128xi32> to vector<4x128xf32>
    %105 = arith.truncf %104 : vector<4x128xf32> to vector<4x128xbf16>
    %c0_16 = arith.constant 0 : index
    %c1792 = arith.constant 1792 : index
    %106 = vector.load %arg4[%c0_16, %c1792] : memref<4x6400xbf16, #tpu.memory_space<vmem>>, vector<4x128xbf16>
    tpu.vector_store %arg4[%c0_16, %c1792], %105 {strides = array<i32>} : memref<4x6400xbf16, #tpu.memory_space<vmem>>, vector<4x128xbf16>,
    %107 = vector.extract_strided_slice %0 {offsets = [0, 15], sizes = [4, 1], strides = [1, 1]} : vector<4x50xi32> to vector<4x1xi32>
    %108 = vector.broadcast %107 : vector<4x1xi32> to vector<4x128xi32>
    %109 = arith.cmpi eq, %108, %1 : vector<4x128xi32>
    %110 = arith.extui %109 : vector<4x128xi1> to vector<4x128xi32>
    %111 = arith.sitofp %110 : vector<4x128xi32> to vector<4x128xf32>
    %112 = arith.truncf %111 : vector<4x128xf32> to vector<4x128xbf16>
    %c0_17 = arith.constant 0 : index
    %c1920 = arith.constant 1920 : index
    %113 = vector.load %arg4[%c0_17, %c1920] : memref<4x6400xbf16, #tpu.memory_space<vmem>>, vector<4x128xbf16>
    tpu.vector_store %arg4[%c0_17, %c1920], %112 {strides = array<i32>} : memref<4x6400xbf16, #tpu.memory_space<vmem>>, vector<4x128xbf16>,
    %114 = vector.extract_strided_slice %0 {offsets = [0, 16], sizes = [4, 1], strides = [1, 1]} : vector<4x50xi32> to vector<4x1xi32>
    %115 = vector.broadcast %114 : vector<4x1xi32> to vector<4x128xi32>
    %116 = arith.cmpi eq, %115, %1 : vector<4x128xi32>
    %117 = arith.extui %116 : vector<4x128xi1> to vector<4x128xi32>
    %118 = arith.sitofp %117 : vector<4x128xi32> to vector<4x128xf32>
    %119 = arith.truncf %118 : vector<4x128xf32> to vector<4x128xbf16>
    %c0_18 = arith.constant 0 : index
    %c2048 = arith.constant 2048 : index
    %120 = vector.load %arg4[%c0_18, %c2048] : memref<4x6400xbf16, #tpu.memory_space<vmem>>, vector<4x128xbf16>
    tpu.vector_store %arg4[%c0_18, %c2048], %119 {strides = array<i32>} : memref<4x6400xbf16, #tpu.memory_space<vmem>>, vector<4x128xbf16>,
    %121 = vector.extract_strided_slice %0 {offsets = [0, 17], sizes = [4, 1], strides = [1, 1]} : vector<4x50xi32> to vector<4x1xi32>
    %122 = vector.broadcast %121 : vector<4x1xi32> to vector<4x128xi32>
    %123 = arith.cmpi eq, %122, %1 : vector<4x128xi32>
    %124 = arith.extui %123 : vector<4x128xi1> to vector<4x128xi32>
    %125 = arith.sitofp %124 : vector<4x128xi32> to vector<4x128xf32>
    %126 = arith.truncf %125 : vector<4x128xf32> to vector<4x128xbf16>
    %c0_19 = arith.constant 0 : index
    %c2176 = arith.constant 2176 : index
    %127 = vector.load %arg4[%c0_19, %c2176] : memref<4x6400xbf16, #tpu.memory_space<vmem>>, vector<4x128xbf16>
    tpu.vector_store %arg4[%c0_19, %c2176], %126 {strides = array<i32>} : memref<4x6400xbf16, #tpu.memory_space<vmem>>, vector<4x128xbf16>,
    %128 = vector.extract_strided_slice %0 {offsets = [0, 18], sizes = [4, 1], strides = [1, 1]} : vector<4x50xi32> to vector<4x1xi32>
    %129 = vector.broadcast %128 : vector<4x1xi32> to vector<4x128xi32>
    %130 = arith.cmpi eq, %129, %1 : vector<4x128xi32>
    %131 = arith.extui %130 : vector<4x128xi1> to vector<4x128xi32>
    %132 = arith.sitofp %131 : vector<4x128xi32> to vector<4x128xf32>
    %133 = arith.truncf %132 : vector<4x128xf32> to vector<4x128xbf16>
    %c0_20 = arith.constant 0 : index
    %c2304 = arith.constant 2304 : index
    %134 = vector.load %arg4[%c0_20, %c2304] : memref<4x6400xbf16, #tpu.memory_space<vmem>>, vector<4x128xbf16>
    tpu.vector_store %arg4[%c0_20, %c2304], %133 {strides = array<i32>} : memref<4x6400xbf16, #tpu.memory_space<vmem>>, vector<4x128xbf16>,
    %135 = vector.extract_strided_slice %0 {offsets = [0, 19], sizes = [4, 1], strides = [1, 1]} : vector<4x50xi32> to vector<4x1xi32>
    %136 = vector.broadcast %135 : vector<4x1xi32> to vector<4x128xi32>
    %137 = arith.cmpi eq, %136, %1 : vector<4x128xi32>
    %138 = arith.extui %137 : vector<4x128xi1> to vector<4x128xi32>
    %139 = arith.sitofp %138 : vector<4x128xi32> to vector<4x128xf32>
    %140 = arith.truncf %139 : vector<4x128xf32> to vector<4x128xbf16>
    %c0_21 = arith.constant 0 : index
    %c2432 = arith.constant 2432 : index
    %141 = vector.load %arg4[%c0_21, %c2432] : memref<4x6400xbf16, #tpu.memory_space<vmem>>, vector<4x128xbf16>
    tpu.vector_store %arg4[%c0_21, %c2432], %140 {strides = array<i32>} : memref<4x6400xbf16, #tpu.memory_space<vmem>>, vector<4x128xbf16>,
    %142 = vector.extract_strided_slice %0 {offsets = [0, 20], sizes = [4, 1], strides = [1, 1]} : vector<4x50xi32> to vector<4x1xi32>
    %143 = vector.broadcast %142 : vector<4x1xi32> to vector<4x128xi32>
    %144 = arith.cmpi eq, %143, %1 : vector<4x128xi32>
    %145 = arith.extui %144 : vector<4x128xi1> to vector<4x128xi32>
    %146 = arith.sitofp %145 : vector<4x128xi32> to vector<4x128xf32>
    %147 = arith.truncf %146 : vector<4x128xf32> to vector<4x128xbf16>
    %c0_22 = arith.constant 0 : index
    %c2560 = arith.constant 2560 : index
    %148 = vector.load %arg4[%c0_22, %c2560] : memref<4x6400xbf16, #tpu.memory_space<vmem>>, vector<4x128xbf16>
    tpu.vector_store %arg4[%c0_22, %c2560], %147 {strides = array<i32>} : memref<4x6400xbf16, #tpu.memory_space<vmem>>, vector<4x128xbf16>,
    %149 = vector.extract_strided_slice %0 {offsets = [0, 21], sizes = [4, 1], strides = [1, 1]} : vector<4x50xi32> to vector<4x1xi32>
    %150 = vector.broadcast %149 : vector<4x1xi32> to vector<4x128xi32>
    %151 = arith.cmpi eq, %150, %1 : vector<4x128xi32>
    %152 = arith.extui %151 : vector<4x128xi1> to vector<4x128xi32>
    %153 = arith.sitofp %152 : vector<4x128xi32> to vector<4x128xf32>
    %154 = arith.truncf %153 : vector<4x128xf32> to vector<4x128xbf16>
    %c0_23 = arith.constant 0 : index
    %c2688 = arith.constant 2688 : index
    %155 = vector.load %arg4[%c0_23, %c2688] : memref<4x6400xbf16, #tpu.memory_space<vmem>>, vector<4x128xbf16>
    tpu.vector_store %arg4[%c0_23, %c2688], %154 {strides = array<i32>} : memref<4x6400xbf16, #tpu.memory_space<vmem>>, vector<4x128xbf16>,
    %156 = vector.extract_strided_slice %0 {offsets = [0, 22], sizes = [4, 1], strides = [1, 1]} : vector<4x50xi32> to vector<4x1xi32>
    %157 = vector.broadcast %156 : vector<4x1xi32> to vector<4x128xi32>
    %158 = arith.cmpi eq, %157, %1 : vector<4x128xi32>
    %159 = arith.extui %158 : vector<4x128xi1> to vector<4x128xi32>
    %160 = arith.sitofp %159 : vector<4x128xi32> to vector<4x128xf32>
    %161 = arith.truncf %160 : vector<4x128xf32> to vector<4x128xbf16>
    %c0_24 = arith.constant 0 : index
    %c2816 = arith.constant 2816 : index
    %162 = vector.load %arg4[%c0_24, %c2816] : memref<4x6400xbf16, #tpu.memory_space<vmem>>, vector<4x128xbf16>
    tpu.vector_store %arg4[%c0_24, %c2816], %161 {strides = array<i32>} : memref<4x6400xbf16, #tpu.memory_space<vmem>>, vector<4x128xbf16>,
    %163 = vector.extract_strided_slice %0 {offsets = [0, 23], sizes = [4, 1], strides = [1, 1]} : vector<4x50xi32> to vector<4x1xi32>
    %164 = vector.broadcast %163 : vector<4x1xi32> to vector<4x128xi32>
    %165 = arith.cmpi eq, %164, %1 : vector<4x128xi32>
    %166 = arith.extui %165 : vector<4x128xi1> to vector<4x128xi32>
    %167 = arith.sitofp %166 : vector<4x128xi32> to vector<4x128xf32>
    %168 = arith.truncf %167 : vector<4x128xf32> to vector<4x128xbf16>
    %c0_25 = arith.constant 0 : index
    %c2944 = arith.constant 2944 : index
    %169 = vector.load %arg4[%c0_25, %c2944] : memref<4x6400xbf16, #tpu.memory_space<vmem>>, vector<4x128xbf16>
    tpu.vector_store %arg4[%c0_25, %c2944], %168 {strides = array<i32>} : memref<4x6400xbf16, #tpu.memory_space<vmem>>, vector<4x128xbf16>,
    %170 = vector.extract_strided_slice %0 {offsets = [0, 24], sizes = [4, 1], strides = [1, 1]} : vector<4x50xi32> to vector<4x1xi32>
    %171 = vector.broadcast %170 : vector<4x1xi32> to vector<4x128xi32>
    %172 = arith.cmpi eq, %171, %1 : vector<4x128xi32>
    %173 = arith.extui %172 : vector<4x128xi1> to vector<4x128xi32>
    %174 = arith.sitofp %173 : vector<4x128xi32> to vector<4x128xf32>
    %175 = arith.truncf %174 : vector<4x128xf32> to vector<4x128xbf16>
    %c0_26 = arith.constant 0 : index
    %c3072 = arith.constant 3072 : index
    %176 = vector.load %arg4[%c0_26, %c3072] : memref<4x6400xbf16, #tpu.memory_space<vmem>>, vector<4x128xbf16>
    tpu.vector_store %arg4[%c0_26, %c3072], %175 {strides = array<i32>} : memref<4x6400xbf16, #tpu.memory_space<vmem>>, vector<4x128xbf16>,
    %177 = vector.extract_strided_slice %0 {offsets = [0, 25], sizes = [4, 1], strides = [1, 1]} : vector<4x50xi32> to vector<4x1xi32>
    %178 = vector.broadcast %177 : vector<4x1xi32> to vector<4x128xi32>
    %179 = arith.cmpi eq, %178, %1 : vector<4x128xi32>
    %180 = arith.extui %179 : vector<4x128xi1> to vector<4x128xi32>
    %181 = arith.sitofp %180 : vector<4x128xi32> to vector<4x128xf32>
    %182 = arith.truncf %181 : vector<4x128xf32> to vector<4x128xbf16>
    %c0_27 = arith.constant 0 : index
    %c3200 = arith.constant 3200 : index
    %183 = vector.load %arg4[%c0_27, %c3200] : memref<4x6400xbf16, #tpu.memory_space<vmem>>, vector<4x128xbf16>
    tpu.vector_store %arg4[%c0_27, %c3200], %182 {strides = array<i32>} : memref<4x6400xbf16, #tpu.memory_space<vmem>>, vector<4x128xbf16>,
    %184 = vector.extract_strided_slice %0 {offsets = [0, 26], sizes = [4, 1], strides = [1, 1]} : vector<4x50xi32> to vector<4x1xi32>
    %185 = vector.broadcast %184 : vector<4x1xi32> to vector<4x128xi32>
    %186 = arith.cmpi eq, %185, %1 : vector<4x128xi32>
    %187 = arith.extui %186 : vector<4x128xi1> to vector<4x128xi32>
    %188 = arith.sitofp %187 : vector<4x128xi32> to vector<4x128xf32>
    %189 = arith.truncf %188 : vector<4x128xf32> to vector<4x128xbf16>
    %c0_28 = arith.constant 0 : index
    %c3328 = arith.constant 3328 : index
    %190 = vector.load %arg4[%c0_28, %c3328] : memref<4x6400xbf16, #tpu.memory_space<vmem>>, vector<4x128xbf16>
    tpu.vector_store %arg4[%c0_28, %c3328], %189 {strides = array<i32>} : memref<4x6400xbf16, #tpu.memory_space<vmem>>, vector<4x128xbf16>,
    %191 = vector.extract_strided_slice %0 {offsets = [0, 27], sizes = [4, 1], strides = [1, 1]} : vector<4x50xi32> to vector<4x1xi32>
    %192 = vector.broadcast %191 : vector<4x1xi32> to vector<4x128xi32>
    %193 = arith.cmpi eq, %192, %1 : vector<4x128xi32>
    %194 = arith.extui %193 : vector<4x128xi1> to vector<4x128xi32>
    %195 = arith.sitofp %194 : vector<4x128xi32> to vector<4x128xf32>
    %196 = arith.truncf %195 : vector<4x128xf32> to vector<4x128xbf16>
    %c0_29 = arith.constant 0 : index
    %c3456 = arith.constant 3456 : index
    %197 = vector.load %arg4[%c0_29, %c3456] : memref<4x6400xbf16, #tpu.memory_space<vmem>>, vector<4x128xbf16>
    tpu.vector_store %arg4[%c0_29, %c3456], %196 {strides = array<i32>} : memref<4x6400xbf16, #tpu.memory_space<vmem>>, vector<4x128xbf16>,
    %198 = vector.extract_strided_slice %0 {offsets = [0, 28], sizes = [4, 1], strides = [1, 1]} : vector<4x50xi32> to vector<4x1xi32>
    %199 = vector.broadcast %198 : vector<4x1xi32> to vector<4x128xi32>
    %200 = arith.cmpi eq, %199, %1 : vector<4x128xi32>
    %201 = arith.extui %200 : vector<4x128xi1> to vector<4x128xi32>
    %202 = arith.sitofp %201 : vector<4x128xi32> to vector<4x128xf32>
    %203 = arith.truncf %202 : vector<4x128xf32> to vector<4x128xbf16>
    %c0_30 = arith.constant 0 : index
    %c3584 = arith.constant 3584 : index
    %204 = vector.load %arg4[%c0_30, %c3584] : memref<4x6400xbf16, #tpu.memory_space<vmem>>, vector<4x128xbf16>
    tpu.vector_store %arg4[%c0_30, %c3584], %203 {strides = array<i32>} : memref<4x6400xbf16, #tpu.memory_space<vmem>>, vector<4x128xbf16>,
    %205 = vector.extract_strided_slice %0 {offsets = [0, 29], sizes = [4, 1], strides = [1, 1]} : vector<4x50xi32> to vector<4x1xi32>
    %206 = vector.broadcast %205 : vector<4x1xi32> to vector<4x128xi32>
    %207 = arith.cmpi eq, %206, %1 : vector<4x128xi32>
    %208 = arith.extui %207 : vector<4x128xi1> to vector<4x128xi32>
    %209 = arith.sitofp %208 : vector<4x128xi32> to vector<4x128xf32>
    %210 = arith.truncf %209 : vector<4x128xf32> to vector<4x128xbf16>
    %c0_31 = arith.constant 0 : index
    %c3712 = arith.constant 3712 : index
    %211 = vector.load %arg4[%c0_31, %c3712] : memref<4x6400xbf16, #tpu.memory_space<vmem>>, vector<4x128xbf16>
    tpu.vector_store %arg4[%c0_31, %c3712], %210 {strides = array<i32>} : memref<4x6400xbf16, #tpu.memory_space<vmem>>, vector<4x128xbf16>,
    %212 = vector.extract_strided_slice %0 {offsets = [0, 30], sizes = [4, 1], strides = [1, 1]} : vector<4x50xi32> to vector<4x1xi32>
    %213 = vector.broadcast %212 : vector<4x1xi32> to vector<4x128xi32>
    %214 = arith.cmpi eq, %213, %1 : vector<4x128xi32>
    %215 = arith.extui %214 : vector<4x128xi1> to vector<4x128xi32>
    %216 = arith.sitofp %215 : vector<4x128xi32> to vector<4x128xf32>
    %217 = arith.truncf %216 : vector<4x128xf32> to vector<4x128xbf16>
    %c0_32 = arith.constant 0 : index
    %c3840 = arith.constant 3840 : index
    %218 = vector.load %arg4[%c0_32, %c3840] : memref<4x6400xbf16, #tpu.memory_space<vmem>>, vector<4x128xbf16>
    tpu.vector_store %arg4[%c0_32, %c3840], %217 {strides = array<i32>} : memref<4x6400xbf16, #tpu.memory_space<vmem>>, vector<4x128xbf16>,
    %219 = vector.extract_strided_slice %0 {offsets = [0, 31], sizes = [4, 1], strides = [1, 1]} : vector<4x50xi32> to vector<4x1xi32>
    %220 = vector.broadcast %219 : vector<4x1xi32> to vector<4x128xi32>
    %221 = arith.cmpi eq, %220, %1 : vector<4x128xi32>
    %222 = arith.extui %221 : vector<4x128xi1> to vector<4x128xi32>
    %223 = arith.sitofp %222 : vector<4x128xi32> to vector<4x128xf32>
    %224 = arith.truncf %223 : vector<4x128xf32> to vector<4x128xbf16>
    %c0_33 = arith.constant 0 : index
    %c3968 = arith.constant 3968 : index
    %225 = vector.load %arg4[%c0_33, %c3968] : memref<4x6400xbf16, #tpu.memory_space<vmem>>, vector<4x128xbf16>
    tpu.vector_store %arg4[%c0_33, %c3968], %224 {strides = array<i32>} : memref<4x6400xbf16, #tpu.memory_space<vmem>>, vector<4x128xbf16>,
    %226 = vector.extract_strided_slice %0 {offsets = [0, 32], sizes = [4, 1], strides = [1, 1]} : vector<4x50xi32> to vector<4x1xi32>
    %227 = vector.broadcast %226 : vector<4x1xi32> to vector<4x128xi32>
    %228 = arith.cmpi eq, %227, %1 : vector<4x128xi32>
    %229 = arith.extui %228 : vector<4x128xi1> to vector<4x128xi32>
    %230 = arith.sitofp %229 : vector<4x128xi32> to vector<4x128xf32>
    %231 = arith.truncf %230 : vector<4x128xf32> to vector<4x128xbf16>
    %c0_34 = arith.constant 0 : index
    %c4096 = arith.constant 4096 : index
    %232 = vector.load %arg4[%c0_34, %c4096] : memref<4x6400xbf16, #tpu.memory_space<vmem>>, vector<4x128xbf16>
    tpu.vector_store %arg4[%c0_34, %c4096], %231 {strides = array<i32>} : memref<4x6400xbf16, #tpu.memory_space<vmem>>, vector<4x128xbf16>,
    %233 = vector.extract_strided_slice %0 {offsets = [0, 33], sizes = [4, 1], strides = [1, 1]} : vector<4x50xi32> to vector<4x1xi32>
    %234 = vector.broadcast %233 : vector<4x1xi32> to vector<4x128xi32>
    %235 = arith.cmpi eq, %234, %1 : vector<4x128xi32>
    %236 = arith.extui %235 : vector<4x128xi1> to vector<4x128xi32>
    %237 = arith.sitofp %236 : vector<4x128xi32> to vector<4x128xf32>
    %238 = arith.truncf %237 : vector<4x128xf32> to vector<4x128xbf16>
    %c0_35 = arith.constant 0 : index
    %c4224 = arith.constant 4224 : index
    %239 = vector.load %arg4[%c0_35, %c4224] : memref<4x6400xbf16, #tpu.memory_space<vmem>>, vector<4x128xbf16>
    tpu.vector_store %arg4[%c0_35, %c4224], %238 {strides = array<i32>} : memref<4x6400xbf16, #tpu.memory_space<vmem>>, vector<4x128xbf16>,
    %240 = vector.extract_strided_slice %0 {offsets = [0, 34], sizes = [4, 1], strides = [1, 1]} : vector<4x50xi32> to vector<4x1xi32>
    %241 = vector.broadcast %240 : vector<4x1xi32> to vector<4x128xi32>
    %242 = arith.cmpi eq, %241, %1 : vector<4x128xi32>
    %243 = arith.extui %242 : vector<4x128xi1> to vector<4x128xi32>
    %244 = arith.sitofp %243 : vector<4x128xi32> to vector<4x128xf32>
    %245 = arith.truncf %244 : vector<4x128xf32> to vector<4x128xbf16>
    %c0_36 = arith.constant 0 : index
    %c4352 = arith.constant 4352 : index
    %246 = vector.load %arg4[%c0_36, %c4352] : memref<4x6400xbf16, #tpu.memory_space<vmem>>, vector<4x128xbf16>
    tpu.vector_store %arg4[%c0_36, %c4352], %245 {strides = array<i32>} : memref<4x6400xbf16, #tpu.memory_space<vmem>>, vector<4x128xbf16>,
    %247 = vector.extract_strided_slice %0 {offsets = [0, 35], sizes = [4, 1], strides = [1, 1]} : vector<4x50xi32> to vector<4x1xi32>
    %248 = vector.broadcast %247 : vector<4x1xi32> to vector<4x128xi32>
    %249 = arith.cmpi eq, %248, %1 : vector<4x128xi32>
    %250 = arith.extui %249 : vector<4x128xi1> to vector<4x128xi32>
    %251 = arith.sitofp %250 : vector<4x128xi32> to vector<4x128xf32>
    %252 = arith.truncf %251 : vector<4x128xf32> to vector<4x128xbf16>
    %c0_37 = arith.constant 0 : index
    %c4480 = arith.constant 4480 : index
    %253 = vector.load %arg4[%c0_37, %c4480] : memref<4x6400xbf16, #tpu.memory_space<vmem>>, vector<4x128xbf16>
    tpu.vector_store %arg4[%c0_37, %c4480], %252 {strides = array<i32>} : memref<4x6400xbf16, #tpu.memory_space<vmem>>, vector<4x128xbf16>,
    %254 = vector.extract_strided_slice %0 {offsets = [0, 36], sizes = [4, 1], strides = [1, 1]} : vector<4x50xi32> to vector<4x1xi32>
    %255 = vector.broadcast %254 : vector<4x1xi32> to vector<4x128xi32>
    %256 = arith.cmpi eq, %255, %1 : vector<4x128xi32>
    %257 = arith.extui %256 : vector<4x128xi1> to vector<4x128xi32>
    %258 = arith.sitofp %257 : vector<4x128xi32> to vector<4x128xf32>
    %259 = arith.truncf %258 : vector<4x128xf32> to vector<4x128xbf16>
    %c0_38 = arith.constant 0 : index
    %c4608 = arith.constant 4608 : index
    %260 = vector.load %arg4[%c0_38, %c4608] : memref<4x6400xbf16, #tpu.memory_space<vmem>>, vector<4x128xbf16>
    tpu.vector_store %arg4[%c0_38, %c4608], %259 {strides = array<i32>} : memref<4x6400xbf16, #tpu.memory_space<vmem>>, vector<4x128xbf16>,
    %261 = vector.extract_strided_slice %0 {offsets = [0, 37], sizes = [4, 1], strides = [1, 1]} : vector<4x50xi32> to vector<4x1xi32>
    %262 = vector.broadcast %261 : vector<4x1xi32> to vector<4x128xi32>
    %263 = arith.cmpi eq, %262, %1 : vector<4x128xi32>
    %264 = arith.extui %263 : vector<4x128xi1> to vector<4x128xi32>
    %265 = arith.sitofp %264 : vector<4x128xi32> to vector<4x128xf32>
    %266 = arith.truncf %265 : vector<4x128xf32> to vector<4x128xbf16>
    %c0_39 = arith.constant 0 : index
    %c4736 = arith.constant 4736 : index
    %267 = vector.load %arg4[%c0_39, %c4736] : memref<4x6400xbf16, #tpu.memory_space<vmem>>, vector<4x128xbf16>
    tpu.vector_store %arg4[%c0_39, %c4736], %266 {strides = array<i32>} : memref<4x6400xbf16, #tpu.memory_space<vmem>>, vector<4x128xbf16>,
    %268 = vector.extract_strided_slice %0 {offsets = [0, 38], sizes = [4, 1], strides = [1, 1]} : vector<4x50xi32> to vector<4x1xi32>
    %269 = vector.broadcast %268 : vector<4x1xi32> to vector<4x128xi32>
    %270 = arith.cmpi eq, %269, %1 : vector<4x128xi32>
    %271 = arith.extui %270 : vector<4x128xi1> to vector<4x128xi32>
    %272 = arith.sitofp %271 : vector<4x128xi32> to vector<4x128xf32>
    %273 = arith.truncf %272 : vector<4x128xf32> to vector<4x128xbf16>
    %c0_40 = arith.constant 0 : index
    %c4864 = arith.constant 4864 : index
    %274 = vector.load %arg4[%c0_40, %c4864] : memref<4x6400xbf16, #tpu.memory_space<vmem>>, vector<4x128xbf16>
    tpu.vector_store %arg4[%c0_40, %c4864], %273 {strides = array<i32>} : memref<4x6400xbf16, #tpu.memory_space<vmem>>, vector<4x128xbf16>,
    %275 = vector.extract_strided_slice %0 {offsets = [0, 39], sizes = [4, 1], strides = [1, 1]} : vector<4x50xi32> to vector<4x1xi32>
    %276 = vector.broadcast %275 : vector<4x1xi32> to vector<4x128xi32>
    %277 = arith.cmpi eq, %276, %1 : vector<4x128xi32>
    %278 = arith.extui %277 : vector<4x128xi1> to vector<4x128xi32>
    %279 = arith.sitofp %278 : vector<4x128xi32> to vector<4x128xf32>
    %280 = arith.truncf %279 : vector<4x128xf32> to vector<4x128xbf16>
    %c0_41 = arith.constant 0 : index
    %c4992 = arith.constant 4992 : index
    %281 = vector.load %arg4[%c0_41, %c4992] : memref<4x6400xbf16, #tpu.memory_space<vmem>>, vector<4x128xbf16>
    tpu.vector_store %arg4[%c0_41, %c4992], %280 {strides = array<i32>} : memref<4x6400xbf16, #tpu.memory_space<vmem>>, vector<4x128xbf16>,
    %282 = vector.extract_strided_slice %0 {offsets = [0, 40], sizes = [4, 1], strides = [1, 1]} : vector<4x50xi32> to vector<4x1xi32>
    %283 = vector.broadcast %282 : vector<4x1xi32> to vector<4x128xi32>
    %284 = arith.cmpi eq, %283, %1 : vector<4x128xi32>
    %285 = arith.extui %284 : vector<4x128xi1> to vector<4x128xi32>
    %286 = arith.sitofp %285 : vector<4x128xi32> to vector<4x128xf32>
    %287 = arith.truncf %286 : vector<4x128xf32> to vector<4x128xbf16>
    %c0_42 = arith.constant 0 : index
    %c5120 = arith.constant 5120 : index
    %288 = vector.load %arg4[%c0_42, %c5120] : memref<4x6400xbf16, #tpu.memory_space<vmem>>, vector<4x128xbf16>
    tpu.vector_store %arg4[%c0_42, %c5120], %287 {strides = array<i32>} : memref<4x6400xbf16, #tpu.memory_space<vmem>>, vector<4x128xbf16>,
    %289 = vector.extract_strided_slice %0 {offsets = [0, 41], sizes = [4, 1], strides = [1, 1]} : vector<4x50xi32> to vector<4x1xi32>
    %290 = vector.broadcast %289 : vector<4x1xi32> to vector<4x128xi32>
    %291 = arith.cmpi eq, %290, %1 : vector<4x128xi32>
    %292 = arith.extui %291 : vector<4x128xi1> to vector<4x128xi32>
    %293 = arith.sitofp %292 : vector<4x128xi32> to vector<4x128xf32>
    %294 = arith.truncf %293 : vector<4x128xf32> to vector<4x128xbf16>
    %c0_43 = arith.constant 0 : index
    %c5248 = arith.constant 5248 : index
    %295 = vector.load %arg4[%c0_43, %c5248] : memref<4x6400xbf16, #tpu.memory_space<vmem>>, vector<4x128xbf16>
    tpu.vector_store %arg4[%c0_43, %c5248], %294 {strides = array<i32>} : memref<4x6400xbf16, #tpu.memory_space<vmem>>, vector<4x128xbf16>,
    %296 = vector.extract_strided_slice %0 {offsets = [0, 42], sizes = [4, 1], strides = [1, 1]} : vector<4x50xi32> to vector<4x1xi32>
    %297 = vector.broadcast %296 : vector<4x1xi32> to vector<4x128xi32>
    %298 = arith.cmpi eq, %297, %1 : vector<4x128xi32>
    %299 = arith.extui %298 : vector<4x128xi1> to vector<4x128xi32>
    %300 = arith.sitofp %299 : vector<4x128xi32> to vector<4x128xf32>
    %301 = arith.truncf %300 : vector<4x128xf32> to vector<4x128xbf16>
    %c0_44 = arith.constant 0 : index
    %c5376 = arith.constant 5376 : index
    %302 = vector.load %arg4[%c0_44, %c5376] : memref<4x6400xbf16, #tpu.memory_space<vmem>>, vector<4x128xbf16>
    tpu.vector_store %arg4[%c0_44, %c5376], %301 {strides = array<i32>} : memref<4x6400xbf16, #tpu.memory_space<vmem>>, vector<4x128xbf16>,
    %303 = vector.extract_strided_slice %0 {offsets = [0, 43], sizes = [4, 1], strides = [1, 1]} : vector<4x50xi32> to vector<4x1xi32>
    %304 = vector.broadcast %303 : vector<4x1xi32> to vector<4x128xi32>
    %305 = arith.cmpi eq, %304, %1 : vector<4x128xi32>
    %306 = arith.extui %305 : vector<4x128xi1> to vector<4x128xi32>
    %307 = arith.sitofp %306 : vector<4x128xi32> to vector<4x128xf32>
    %308 = arith.truncf %307 : vector<4x128xf32> to vector<4x128xbf16>
    %c0_45 = arith.constant 0 : index
    %c5504 = arith.constant 5504 : index
    %309 = vector.load %arg4[%c0_45, %c5504] : memref<4x6400xbf16, #tpu.memory_space<vmem>>, vector<4x128xbf16>
    tpu.vector_store %arg4[%c0_45, %c5504], %308 {strides = array<i32>} : memref<4x6400xbf16, #tpu.memory_space<vmem>>, vector<4x128xbf16>,
    %310 = vector.extract_strided_slice %0 {offsets = [0, 44], sizes = [4, 1], strides = [1, 1]} : vector<4x50xi32> to vector<4x1xi32>
    %311 = vector.broadcast %310 : vector<4x1xi32> to vector<4x128xi32>
    %312 = arith.cmpi eq, %311, %1 : vector<4x128xi32>
    %313 = arith.extui %312 : vector<4x128xi1> to vector<4x128xi32>
    %314 = arith.sitofp %313 : vector<4x128xi32> to vector<4x128xf32>
    %315 = arith.truncf %314 : vector<4x128xf32> to vector<4x128xbf16>
    %c0_46 = arith.constant 0 : index
    %c5632 = arith.constant 5632 : index
    %316 = vector.load %arg4[%c0_46, %c5632] : memref<4x6400xbf16, #tpu.memory_space<vmem>>, vector<4x128xbf16>
    tpu.vector_store %arg4[%c0_46, %c5632], %315 {strides = array<i32>} : memref<4x6400xbf16, #tpu.memory_space<vmem>>, vector<4x128xbf16>,
    %317 = vector.extract_strided_slice %0 {offsets = [0, 45], sizes = [4, 1], strides = [1, 1]} : vector<4x50xi32> to vector<4x1xi32>
    %318 = vector.broadcast %317 : vector<4x1xi32> to vector<4x128xi32>
    %319 = arith.cmpi eq, %318, %1 : vector<4x128xi32>
    %320 = arith.extui %319 : vector<4x128xi1> to vector<4x128xi32>
    %321 = arith.sitofp %320 : vector<4x128xi32> to vector<4x128xf32>
    %322 = arith.truncf %321 : vector<4x128xf32> to vector<4x128xbf16>
    %c0_47 = arith.constant 0 : index
    %c5760 = arith.constant 5760 : index
    %323 = vector.load %arg4[%c0_47, %c5760] : memref<4x6400xbf16, #tpu.memory_space<vmem>>, vector<4x128xbf16>
    tpu.vector_store %arg4[%c0_47, %c5760], %322 {strides = array<i32>} : memref<4x6400xbf16, #tpu.memory_space<vmem>>, vector<4x128xbf16>,
    %324 = vector.extract_strided_slice %0 {offsets = [0, 46], sizes = [4, 1], strides = [1, 1]} : vector<4x50xi32> to vector<4x1xi32>
    %325 = vector.broadcast %324 : vector<4x1xi32> to vector<4x128xi32>
    %326 = arith.cmpi eq, %325, %1 : vector<4x128xi32>
    %327 = arith.extui %326 : vector<4x128xi1> to vector<4x128xi32>
    %328 = arith.sitofp %327 : vector<4x128xi32> to vector<4x128xf32>
    %329 = arith.truncf %328 : vector<4x128xf32> to vector<4x128xbf16>
    %c0_48 = arith.constant 0 : index
    %c5888 = arith.constant 5888 : index
    %330 = vector.load %arg4[%c0_48, %c5888] : memref<4x6400xbf16, #tpu.memory_space<vmem>>, vector<4x128xbf16>
    tpu.vector_store %arg4[%c0_48, %c5888], %329 {strides = array<i32>} : memref<4x6400xbf16, #tpu.memory_space<vmem>>, vector<4x128xbf16>,
    %331 = vector.extract_strided_slice %0 {offsets = [0, 47], sizes = [4, 1], strides = [1, 1]} : vector<4x50xi32> to vector<4x1xi32>
    %332 = vector.broadcast %331 : vector<4x1xi32> to vector<4x128xi32>
    %333 = arith.cmpi eq, %332, %1 : vector<4x128xi32>
    %334 = arith.extui %333 : vector<4x128xi1> to vector<4x128xi32>
    %335 = arith.sitofp %334 : vector<4x128xi32> to vector<4x128xf32>
    %336 = arith.truncf %335 : vector<4x128xf32> to vector<4x128xbf16>
    %c0_49 = arith.constant 0 : index
    %c6016 = arith.constant 6016 : index
    %337 = vector.load %arg4[%c0_49, %c6016] : memref<4x6400xbf16, #tpu.memory_space<vmem>>, vector<4x128xbf16>
    tpu.vector_store %arg4[%c0_49, %c6016], %336 {strides = array<i32>} : memref<4x6400xbf16, #tpu.memory_space<vmem>>, vector<4x128xbf16>,
    %338 = vector.extract_strided_slice %0 {offsets = [0, 48], sizes = [4, 1], strides = [1, 1]} : vector<4x50xi32> to vector<4x1xi32>
    %339 = vector.broadcast %338 : vector<4x1xi32> to vector<4x128xi32>
    %340 = arith.cmpi eq, %339, %1 : vector<4x128xi32>
    %341 = arith.extui %340 : vector<4x128xi1> to vector<4x128xi32>
    %342 = arith.sitofp %341 : vector<4x128xi32> to vector<4x128xf32>
    %343 = arith.truncf %342 : vector<4x128xf32> to vector<4x128xbf16>
    %c0_50 = arith.constant 0 : index
    %c6144 = arith.constant 6144 : index
    %344 = vector.load %arg4[%c0_50, %c6144] : memref<4x6400xbf16, #tpu.memory_space<vmem>>, vector<4x128xbf16>
    tpu.vector_store %arg4[%c0_50, %c6144], %343 {strides = array<i32>} : memref<4x6400xbf16, #tpu.memory_space<vmem>>, vector<4x128xbf16>,
    %345 = vector.extract_strided_slice %0 {offsets = [0, 49], sizes = [4, 1], strides = [1, 1]} : vector<4x50xi32> to vector<4x1xi32>
    %346 = vector.broadcast %345 : vector<4x1xi32> to vector<4x128xi32>
    %347 = arith.cmpi eq, %346, %1 : vector<4x128xi32>
    %348 = arith.extui %347 : vector<4x128xi1> to vector<4x128xi32>
    %349 = arith.sitofp %348 : vector<4x128xi32> to vector<4x128xf32>
    %350 = arith.truncf %349 : vector<4x128xf32> to vector<4x128xbf16>
    %c0_51 = arith.constant 0 : index
    %c6272 = arith.constant 6272 : index
    %351 = vector.load %arg4[%c0_51, %c6272] : memref<4x6400xbf16, #tpu.memory_space<vmem>>, vector<4x128xbf16>
    tpu.vector_store %arg4[%c0_51, %c6272], %350 {strides = array<i32>} : memref<4x6400xbf16, #tpu.memory_space<vmem>>, vector<4x128xbf16>,
    %c0_52 = arith.constant 0 : index
    %c0_53 = arith.constant 0 : index
    %352 = vector.load %arg4[%c0_52, %c0_53] : memref<4x6400xbf16, #tpu.memory_space<vmem>>, vector<4x6400xbf16>
    %c0_54 = arith.constant 0 : index
    %c0_55 = arith.constant 0 : index
    %353 = vector.load %arg1[%c0_54, %c0_55] : memref<6x6400xbf16, #tpu.memory_space<vmem>>, vector<6x6400xbf16>
    %cst = arith.constant dense<0.000000e+00> : vector<4x6xf32>
    %354 = tpu.matmul %352, %353, %cst {dimension_numbers = #tpu.dot_dimension_numbers<[1], [1], [0], [0], [0, 0, 1, 0], [], []>} : vector<4x6400xbf16>, vector<6x6400xbf16>, vector<4x6xf32> -> vector<4x6xf32>
    %c0_56 = arith.constant 0 : index
    %c0_57 = arith.constant 0 : index
    %355 = vector.load %arg2[%c0_56, %c0_57] : memref<1x6xf32, #tpu.memory_space<vmem>>, vector<1x6xf32>
    %356 = vector.broadcast %355 : vector<1x6xf32> to vector<4x6xf32>
    %357 = arith.addf %354, %356 : vector<4x6xf32>
    %c0_58 = arith.constant 0 : index
    %c0_59 = arith.constant 0 : index
    %358 = vector.load %arg3[%c0_58, %c0_59] : memref<4x6xf32, #tpu.memory_space<vmem>>, vector<4x6xf32>
    tpu.vector_store %arg3[%c0_58, %c0_59], %357 {strides = array<i32>} : memref<4x6xf32, #tpu.memory_space<vmem>>, vector<4x6xf32>,
    return
  }
}

</mosaic_0001>

<llo_original>
// kernel: logistic_regression_forward.1
$region0: #{logistic_regression_forward.1}
  #allocation0 [shape = 'u32[]', space=smem, size = 0x4, offset = 0x4, fixed_abs, tag = 'smem constant byte address 0x4 - core index']
  #allocation1 [shape = 'u32[144,128]{1,0:T(1,128)}', space=vmem, size = 0x12000, scoped, tag = 'internal scratch']
  #allocation2 [shape = 'bf16[4,6400]{1,0:T(4,128)(2,1)}', space=vmem, size = 0xc800, scoped, tag = 'scratch operand']
  %s0 = inlined_call_operand.hbm [shape: s32[4,50], index: 0, kind: input, shape index: {}]
  %s1 = inlined_call_operand.hbm [shape: bf16[6,6400], index: 1, kind: input, shape index: {}]
  %s2 = inlined_call_operand.hbm [shape: f32[1,6], index: 2, kind: input, shape index: {}]
  %s3 = inlined_call_operand.hbm [shape: f32[4,6], index: 3, kind: output, shape index: {}]
  %s4 = sld [smem:[#allocation0]]
  $region34: #{logistic_regression_forward.1} parent=0
    _
  %s6 = ssub.s32 1, %s4
  %s7 = scalar_select 0, %s6, %s4
  $region1: #{logistic_regression_forward.1} parent=0
    #allocation3 [shape = 'u8[2048]{0}', space=vmem, size = 0x800, scoped, tag = 'input window, operand 0, single buffered']
    #allocation4 [shape = 's32[1]{0}', space=sflag, size = 0x4, scoped, tag = 'scoped memory for logistic_regression_forward.1']
    #allocation5 [shape = 's32[1]{0}', space=sflag, size = 0x4, scoped, tag = 'scoped memory for logistic_regression_forward.1']
    #allocation6 [shape = 'u8[102400]{0}', space=vmem, size = 0x19000, scoped, tag = 'input window, operand 1, single buffered']
    #allocation7 [shape = 's32[1]{0}', space=sflag, size = 0x4, scoped, tag = 'scoped memory for logistic_regression_forward.1']
    #allocation8 [shape = 'u8[512]{0}', space=vmem, size = 0x400, scoped, tag = 'input window, operand 2, single buffered']
    #allocation9 [shape = 'u8[2048]{0}', space=vmem, size = 0x800, scoped, tag = 'output window, operand 0, single buffered']
    %8 = vsyncpa [#allocation4], 0
    %9 = vsyncpa [#allocation7], 0
    %10 = vsyncpa [#allocation5], 0
    // Predicated region
    $region2: #{logistic_regression_forward.1} parent=1 // pred_check
      _
    $region3: #{logistic_regression_forward.1} parent=1 // pred_check_branch
      %12 = sbr.rel (0) target = $region5
    $region4: #{logistic_regression_forward.1} parent=1 // pred_region
      %s14 = ssub.s32 64, 64
      %15 = vsyncadd [#allocation4], %s14
      %s17 = sshll.u32 [#allocation3], 4
      %s18 = int_to_ptr.vmem [resolvable:$true] %s17
      %20 = dma.hbm_to_vmem [thread:$0]  %s0, 64, %s18, [#allocation4]
    $region5: #{logistic_regression_forward.1} parent=1 // pred_fallthru
      _
    // Predicated region
    $region6: #{logistic_regression_forward.1} parent=1 // pred_check
      _
    $region7: #{logistic_regression_forward.1} parent=1 // pred_check_branch
      %22 = sbr.rel (0) target = $region9
    $region8: #{logistic_regression_forward.1} parent=1 // pred_region
      %s24 = ssub.s32 3200, 3200
      %25 = vsyncadd [#allocation7], %s24
      %s27 = sshll.u32 [#allocation6], 4
      %s28 = int_to_ptr.vmem [resolvable:$true] %s27
      %30 = dma.hbm_to_vmem [thread:$0]  %s1, 3200, %s28, [#allocation7]
    $region9: #{logistic_regression_forward.1} parent=1 // pred_fallthru
      _
    // Predicated region
    $region10: #{logistic_regression_forward.1} parent=1 // pred_check
      _
    $region11: #{logistic_regression_forward.1} parent=1 // pred_check_branch
      %32 = sbr.rel (0) target = $region13
    $region12: #{logistic_regression_forward.1} parent=1 // pred_region
      %s34 = ssub.s32 16, 16
      %35 = vsyncadd [#allocation7], %s34
      %s37 = sshll.u32 [#allocation8], 4
      %s38 = int_to_ptr.vmem [resolvable:$true] %s37
      %40 = dma.hbm_to_vmem [thread:$0]  %s2, 16, %s38, [#allocation7]
    $region13: #{logistic_regression_forward.1} parent=1 // pred_fallthru
      _
    // Predicated region
    $region14: #{logistic_regression_forward.1} parent=1 // pred_check
      _
    $region15: #{logistic_regression_forward.1} parent=1 // pred_check_branch
      %42 = sbr.rel (0) target = $region17
    $region16: #{logistic_regression_forward.1} parent=1 // pred_region
      %43 = dma.done [#allocation4], 64
    $region17: #{logistic_regression_forward.1} parent=1 // pred_fallthru
      _
    // Predicated region
    $region18: #{logistic_regression_forward.1} parent=1 // pred_check
      _
    $region19: #{logistic_regression_forward.1} parent=1 // pred_check_branch
      %45 = sbr.rel (0) target = $region21
    $region20: #{logistic_regression_forward.1} parent=1 // pred_region
      %46 = dma.done [#allocation7], 3200
    $region21: #{logistic_regression_forward.1} parent=1 // pred_fallthru
      _
    // Predicated region
    $region22: #{logistic_regression_forward.1} parent=1 // pred_check
      _
    $region23: #{logistic_regression_forward.1} parent=1 // pred_check_branch
      %48 = sbr.rel (0) target = $region25
    $region24: #{logistic_regression_forward.1} parent=1 // pred_region
      %49 = dma.done [#allocation7], 16
    $region25: #{logistic_regression_forward.1} parent=1 // pred_fallthru
      _
    %v51 = vld [vmem:[#allocation3] sm:$0xf]
    %v52 = vlaneseq
    %v53 = vand.u32 %v52, 127
    %54 = vset.pattern.permute.xlu0 0
    %55 = vperm.xlu0 %54, %v51
    %v56 = vpop.permute.xlu0 %55
    %vm57 = vcmp.eq.s32.totalorder %v56, %v53
    %v58 = vsel %vm57, 1, 0
    %v59 = vcvt.s32.f32 %v58
    %v60 = vpack.c.bf16 %v59, %v59
    %61 = vst [vmem:[#allocation2] sm:$0x3] %v60
    %62 = vset.pattern.permute.xlu0 1
    %63 = vperm.xlu0 %62, %v51
    %v64 = vpop.permute.xlu0 %63
    %vm65 = vcmp.eq.s32.totalorder %v64, %v53
    %v66 = vsel %vm65, 1, 0
    %v67 = vcvt.s32.f32 %v66
    %v68 = vpack.c.bf16 %v67, %v67
    %69 = vst [vmem:[#allocation2 + $0x2] sm:$0x3] %v68
    %70 = vset.pattern.permute.xlu0 2
    %71 = vperm.xlu0 %70, %v51
    %v72 = vpop.permute.xlu0 %71
    %vm73 = vcmp.eq.s32.totalorder %v72, %v53
    %v74 = vsel %vm73, 1, 0
    %v75 = vcvt.s32.f32 %v74
    %v76 = vpack.c.bf16 %v75, %v75
    %77 = vst [vmem:[#allocation2 + $0x4] sm:$0x3] %v76
    %78 = vset.pattern.permute.xlu0 3
    %79 = vperm.xlu0 %78, %v51
    %v80 = vpop.permute.xlu0 %79
    %vm81 = vcmp.eq.s32.totalorder %v80, %v53
    %v82 = vsel %vm81, 1, 0
    %v83 = vcvt.s32.f32 %v82
    %v84 = vpack.c.bf16 %v83, %v83
    %85 = vst [vmem:[#allocation2 + $0x6] sm:$0x3] %v84
    %86 = vset.pattern.permute.xlu0 4
    %87 = vperm.xlu0 %86, %v51
    %v88 = vpop.permute.xlu0 %87
    %vm89 = vcmp.eq.s32.totalorder %v88, %v53
    %v90 = vsel %vm89, 1, 0
    %v91 = vcvt.s32.f32 %v90
    %v92 = vpack.c.bf16 %v91, %v91
    %93 = vst [vmem:[#allocation2 + $0x8] sm:$0x3] %v92
    %94 = vset.pattern.permute.xlu0 5
    %95 = vperm.xlu0 %94, %v51
    %v96 = vpop.permute.xlu0 %95
    %vm97 = vcmp.eq.s32.totalorder %v96, %v53
    %v98 = vsel %vm97, 1, 0
    %v99 = vcvt.s32.f32 %v98
    %v100 = vpack.c.bf16 %v99, %v99
    %101 = vst [vmem:[#allocation2 + $0xa] sm:$0x3] %v100
    %102 = vset.pattern.permute.xlu0 6
    %103 = vperm.xlu0 %102, %v51
    %v104 = vpop.permute.xlu0 %103
    %vm105 = vcmp.eq.s32.totalorder %v104, %v53
    %v106 = vsel %vm105, 1, 0
    %v107 = vcvt.s32.f32 %v106
    %v108 = vpack.c.bf16 %v107, %v107
    %109 = vst [vmem:[#allocation2 + $0xc] sm:$0x3] %v108
    %110 = vset.pattern.permute.xlu0 7
    %111 = vperm.xlu0 %110, %v51
    %v112 = vpop.permute.xlu0 %111
    %vm113 = vcmp.eq.s32.totalorder %v112, %v53
    %v114 = vsel %vm113, 1, 0
    %v115 = vcvt.s32.f32 %v114
    %v116 = vpack.c.bf16 %v115, %v115
    %117 = vst [vmem:[#allocation2 + $0xe] sm:$0x3] %v116
    %118 = vset.pattern.permute.xlu0 8
    %119 = vperm.xlu0 %118, %v51
    %v120 = vpop.permute.xlu0 %119
    %vm121 = vcmp.eq.s32.totalorder %v120, %v53
    %v122 = vsel %vm121, 1, 0
    %v123 = vcvt.s32.f32 %v122
    %v124 = vpack.c.bf16 %v123, %v123
    %125 = vst [vmem:[#allocation2 + $0x10] sm:$0x3] %v124
    %126 = vset.pattern.permute.xlu0 9
    %127 = vperm.xlu0 %126, %v51
    %v128 = vpop.permute.xlu0 %127
    %vm129 = vcmp.eq.s32.totalorder %v128, %v53
    %v130 = vsel %vm129, 1, 0
    %v131 = vcvt.s32.f32 %v130
    %v132 = vpack.c.bf16 %v131, %v131
    %133 = vst [vmem:[#allocation2 + $0x12] sm:$0x3] %v132
    %134 = vset.pattern.permute.xlu0 10
    %135 = vperm.xlu0 %134, %v51
    %v136 = vpop.permute.xlu0 %135
    %vm137 = vcmp.eq.s32.totalorder %v136, %v53
    %v138 = vsel %vm137, 1, 0
    %v139 = vcvt.s32.f32 %v138
    %v140 = vpack.c.bf16 %v139, %v139
    %141 = vst [vmem:[#allocation2 + $0x14] sm:$0x3] %v140
    %142 = vset.pattern.permute.xlu0 11
    %143 = vperm.xlu0 %142, %v51
    %v144 = vpop.permute.xlu0 %143
    %vm145 = vcmp.eq.s32.totalorder %v144, %v53
    %v146 = vsel %vm145, 1, 0
    %v147 = vcvt.s32.f32 %v146
    %v148 = vpack.c.bf16 %v147, %v147
    %149 = vst [vmem:[#allocation2 + $0x16] sm:$0x3] %v148
    %150 = vset.pattern.permute.xlu0 12
    %151 = vperm.xlu0 %150, %v51
    %v152 = vpop.permute.xlu0 %151
    %vm153 = vcmp.eq.s32.totalorder %v152, %v53
    %v154 = vsel %vm153, 1, 0
    %v155 = vcvt.s32.f32 %v154
    %v156 = vpack.c.bf16 %v155, %v155
    %157 = vst [vmem:[#allocation2 + $0x18] sm:$0x3] %v156
    %158 = vset.pattern.permute.xlu0 13
    %159 = vperm.xlu0 %158, %v51
    %v160 = vpop.permute.xlu0 %159
    %vm161 = vcmp.eq.s32.totalorder %v160, %v53
    %v162 = vsel %vm161, 1, 0
    %v163 = vcvt.s32.f32 %v162
    %v164 = vpack.c.bf16 %v163, %v163
    %165 = vst [vmem:[#allocation2 + $0x1a] sm:$0x3] %v164
    %166 = vset.pattern.permute.xlu0 14
    %167 = vperm.xlu0 %166, %v51
    %v168 = vpop.permute.xlu0 %167
    %vm169 = vcmp.eq.s32.totalorder %v168, %v53
    %v170 = vsel %vm169, 1, 0
    %v171 = vcvt.s32.f32 %v170
    %v172 = vpack.c.bf16 %v171, %v171
    %173 = vst [vmem:[#allocation2 + $0x1c] sm:$0x3] %v172
    %174 = vset.pattern.permute.xlu0 15
    %175 = vperm.xlu0 %174, %v51
    %v176 = vpop.permute.xlu0 %175
    %vm177 = vcmp.eq.s32.totalorder %v176, %v53
    %v178 = vsel %vm177, 1, 0
    %v179 = vcvt.s32.f32 %v178
    %v180 = vpack.c.bf16 %v179, %v179
    %181 = vst [vmem:[#allocation2 + $0x1e] sm:$0x3] %v180
    %182 = vset.pattern.permute.xlu0 16
    %183 = vperm.xlu0 %182, %v51
    %v184 = vpop.permute.xlu0 %183
    %vm185 = vcmp.eq.s32.totalorder %v184, %v53
    %v186 = vsel %vm185, 1, 0
    %v187 = vcvt.s32.f32 %v186
    %v188 = vpack.c.bf16 %v187, %v187
    %189 = vst [vmem:[#allocation2 + $0x20] sm:$0x3] %v188
    %190 = vset.pattern.permute.xlu0 17
    %191 = vperm.xlu0 %190, %v51
    %v192 = vpop.permute.xlu0 %191
    %vm193 = vcmp.eq.s32.totalorder %v192, %v53
    %v194 = vsel %vm193, 1, 0
    %v195 = vcvt.s32.f32 %v194
    %v196 = vpack.c.bf16 %v195, %v195
    %197 = vst [vmem:[#allocation2 + $0x22] sm:$0x3] %v196
    %198 = vset.pattern.permute.xlu0 18
    %199 = vperm.xlu0 %198, %v51
    %v200 = vpop.permute.xlu0 %199
    %vm201 = vcmp.eq.s32.totalorder %v200, %v53
    %v202 = vsel %vm201, 1, 0
    %v203 = vcvt.s32.f32 %v202
    %v204 = vpack.c.bf16 %v203, %v203
    %205 = vst [vmem:[#allocation2 + $0x24] sm:$0x3] %v204
    %206 = vset.pattern.permute.xlu0 19
    %207 = vperm.xlu0 %206, %v51
    %v208 = vpop.permute.xlu0 %207
    %vm209 = vcmp.eq.s32.totalorder %v208, %v53
    %v210 = vsel %vm209, 1, 0
    %v211 = vcvt.s32.f32 %v210
    %v212 = vpack.c.bf16 %v211, %v211
    %213 = vst [vmem:[#allocation2 + $0x26] sm:$0x3] %v212
    %214 = vset.pattern.permute.xlu0 20
    %215 = vperm.xlu0 %214, %v51
    %v216 = vpop.permute.xlu0 %215
    %vm217 = vcmp.eq.s32.totalorder %v216, %v53
    %v218 = vsel %vm217, 1, 0
    %v219 = vcvt.s32.f32 %v218
    %v220 = vpack.c.bf16 %v219, %v219
    %221 = vst [vmem:[#allocation2 + $0x28] sm:$0x3] %v220
    %222 = vset.pattern.permute.xlu0 21
    %223 = vperm.xlu0 %222, %v51
    %v224 = vpop.permute.xlu0 %223
    %vm225 = vcmp.eq.s32.totalorder %v224, %v53
    %v226 = vsel %vm225, 1, 0
    %v227 = vcvt.s32.f32 %v226
    %v228 = vpack.c.bf16 %v227, %v227
    %229 = vst [vmem:[#allocation2 + $0x2a] sm:$0x3] %v228
    %230 = vset.pattern.permute.xlu0 22
    %231 = vperm.xlu0 %230, %v51
    %v232 = vpop.permute.xlu0 %231
    %vm233 = vcmp.eq.s32.totalorder %v232, %v53
    %v234 = vsel %vm233, 1, 0
    %v235 = vcvt.s32.f32 %v234
    %v236 = vpack.c.bf16 %v235, %v235
    %237 = vst [vmem:[#allocation2 + $0x2c] sm:$0x3] %v236
    %238 = vset.pattern.permute.xlu0 23
    %239 = vperm.xlu0 %238, %v51
    %v240 = vpop.permute.xlu0 %239
    %vm241 = vcmp.eq.s32.totalorder %v240, %v53
    %v242 = vsel %vm241, 1, 0
    %v243 = vcvt.s32.f32 %v242
    %v244 = vpack.c.bf16 %v243, %v243
    %245 = vst [vmem:[#allocation2 + $0x2e] sm:$0x3] %v244
    %246 = vset.pattern.permute.xlu0 24
    %247 = vperm.xlu0 %246, %v51
    %v248 = vpop.permute.xlu0 %247
    %vm249 = vcmp.eq.s32.totalorder %v248, %v53
    %v250 = vsel %vm249, 1, 0
    %v251 = vcvt.s32.f32 %v250
    %v252 = vpack.c.bf16 %v251, %v251
    %253 = vst [vmem:[#allocation2 + $0x30] sm:$0x3] %v252
    %254 = vset.pattern.permute.xlu0 25
    %255 = vperm.xlu0 %254, %v51
    %v256 = vpop.permute.xlu0 %255
    %vm257 = vcmp.eq.s32.totalorder %v256, %v53
    %v258 = vsel %vm257, 1, 0
    %v259 = vcvt.s32.f32 %v258
    %v260 = vpack.c.bf16 %v259, %v259
    %261 = vst [vmem:[#allocation2 + $0x32] sm:$0x3] %v260
    %262 = vset.pattern.permute.xlu0 26
    %263 = vperm.xlu0 %262, %v51
    %v264 = vpop.permute.xlu0 %263
    %vm265 = vcmp.eq.s32.totalorder %v264, %v53
    %v266 = vsel %vm265, 1, 0
    %v267 = vcvt.s32.f32 %v266
    %v268 = vpack.c.bf16 %v267, %v267
    %269 = vst [vmem:[#allocation2 + $0x34] sm:$0x3] %v268
    %270 = vset.pattern.permute.xlu0 27
    %271 = vperm.xlu0 %270, %v51
    %v272 = vpop.permute.xlu0 %271
    %vm273 = vcmp.eq.s32.totalorder %v272, %v53
    %v274 = vsel %vm273, 1, 0
    %v275 = vcvt.s32.f32 %v274
    %v276 = vpack.c.bf16 %v275, %v275
    %277 = vst [vmem:[#allocation2 + $0x36] sm:$0x3] %v276
    %278 = vset.pattern.permute.xlu0 28
    %279 = vperm.xlu0 %278, %v51
    %v280 = vpop.permute.xlu0 %279
    %vm281 = vcmp.eq.s32.totalorder %v280, %v53
    %v282 = vsel %vm281, 1, 0
    %v283 = vcvt.s32.f32 %v282
    %v284 = vpack.c.bf16 %v283, %v283
    %285 = vst [vmem:[#allocation2 + $0x38] sm:$0x3] %v284
    %286 = vset.pattern.permute.xlu0 29
    %287 = vperm.xlu0 %286, %v51
    %v288 = vpop.permute.xlu0 %287
    %vm289 = vcmp.eq.s32.totalorder %v288, %v53
    %v290 = vsel %vm289, 1, 0
    %v291 = vcvt.s32.f32 %v290
    %v292 = vpack.c.bf16 %v291, %v291
    %293 = vst [vmem:[#allocation2 + $0x3a] sm:$0x3] %v292
    %294 = vset.pattern.permute.xlu0 30
    %295 = vperm.xlu0 %294, %v51
    %v296 = vpop.permute.xlu0 %295
    %vm297 = vcmp.eq.s32.totalorder %v296, %v53
    %v298 = vsel %vm297, 1, 0
    %v299 = vcvt.s32.f32 %v298
    %v300 = vpack.c.bf16 %v299, %v299
    %301 = vst [vmem:[#allocation2 + $0x3c] sm:$0x3] %v300
    %302 = vset.pattern.permute.xlu0 31
    %303 = vperm.xlu0 %302, %v51
    %v304 = vpop.permute.xlu0 %303
    %vm305 = vcmp.eq.s32.totalorder %v304, %v53
    %v306 = vsel %vm305, 1, 0
    %v307 = vcvt.s32.f32 %v306
    %v308 = vpack.c.bf16 %v307, %v307
    %309 = vst [vmem:[#allocation2 + $0x3e] sm:$0x3] %v308
    %310 = vset.pattern.permute.xlu0 32
    %311 = vperm.xlu0 %310, %v51
    %v312 = vpop.permute.xlu0 %311
    %vm313 = vcmp.eq.s32.totalorder %v312, %v53
    %v314 = vsel %vm313, 1, 0
    %v315 = vcvt.s32.f32 %v314
    %v316 = vpack.c.bf16 %v315, %v315
    %317 = vst [vmem:[#allocation2 + $0x40] sm:$0x3] %v316
    %318 = vset.pattern.permute.xlu0 33
    %319 = vperm.xlu0 %318, %v51
    %v320 = vpop.permute.xlu0 %319
    %vm321 = vcmp.eq.s32.totalorder %v320, %v53
    %v322 = vsel %vm321, 1, 0
    %v323 = vcvt.s32.f32 %v322
    %v324 = vpack.c.bf16 %v323, %v323
    %325 = vst [vmem:[#allocation2 + $0x42] sm:$0x3] %v324
    %326 = vset.pattern.permute.xlu0 34
    %327 = vperm.xlu0 %326, %v51
    %v328 = vpop.permute.xlu0 %327
    %vm329 = vcmp.eq.s32.totalorder %v328, %v53
    %v330 = vsel %vm329, 1, 0
    %v331 = vcvt.s32.f32 %v330
    %v332 = vpack.c.bf16 %v331, %v331
    %333 = vst [vmem:[#allocation2 + $0x44] sm:$0x3] %v332
    %334 = vset.pattern.permute.xlu0 35
    %335 = vperm.xlu0 %334, %v51
    %v336 = vpop.permute.xlu0 %335
    %vm337 = vcmp.eq.s32.totalorder %v336, %v53
    %v338 = vsel %vm337, 1, 0
    %v339 = vcvt.s32.f32 %v338
    %v340 = vpack.c.bf16 %v339, %v339
    %341 = vst [vmem:[#allocation2 + $0x46] sm:$0x3] %v340
    %342 = vset.pattern.permute.xlu0 36
    %343 = vperm.xlu0 %342, %v51
    %v344 = vpop.permute.xlu0 %343
    %vm345 = vcmp.eq.s32.totalorder %v344, %v53
    %v346 = vsel %vm345, 1, 0
    %v347 = vcvt.s32.f32 %v346
    %v348 = vpack.c.bf16 %v347, %v347
    %349 = vst [vmem:[#allocation2 + $0x48] sm:$0x3] %v348
    %350 = vset.pattern.permute.xlu0 37
    %351 = vperm.xlu0 %350, %v51
    %v352 = vpop.permute.xlu0 %351
    %vm353 = vcmp.eq.s32.totalorder %v352, %v53
    %v354 = vsel %vm353, 1, 0
    %v355 = vcvt.s32.f32 %v354
    %v356 = vpack.c.bf16 %v355, %v355
    %357 = vst [vmem:[#allocation2 + $0x4a] sm:$0x3] %v356
    %358 = vset.pattern.permute.xlu0 38
    %359 = vperm.xlu0 %358, %v51
    %v360 = vpop.permute.xlu0 %359
    %vm361 = vcmp.eq.s32.totalorder %v360, %v53
    %v362 = vsel %vm361, 1, 0
    %v363 = vcvt.s32.f32 %v362
    %v364 = vpack.c.bf16 %v363, %v363
    %365 = vst [vmem:[#allocation2 + $0x4c] sm:$0x3] %v364
    %366 = vset.pattern.permute.xlu0 39
    %367 = vperm.xlu0 %366, %v51
    %v368 = vpop.permute.xlu0 %367
    %vm369 = vcmp.eq.s32.totalorder %v368, %v53
    %v370 = vsel %vm369, 1, 0
    %v371 = vcvt.s32.f32 %v370
    %v372 = vpack.c.bf16 %v371, %v371
    %373 = vst [vmem:[#allocation2 + $0x4e] sm:$0x3] %v372
    %374 = vset.pattern.permute.xlu0 40
    %375 = vperm.xlu0 %374, %v51
    %v376 = vpop.permute.xlu0 %375
    %vm377 = vcmp.eq.s32.totalorder %v376, %v53
    %v378 = vsel %vm377, 1, 0
    %v379 = vcvt.s32.f32 %v378
    %v380 = vpack.c.bf16 %v379, %v379
    %381 = vst [vmem:[#allocation2 + $0x50] sm:$0x3] %v380
    %382 = vset.pattern.permute.xlu0 41
    %383 = vperm.xlu0 %382, %v51
    %v384 = vpop.permute.xlu0 %383
    %vm385 = vcmp.eq.s32.totalorder %v384, %v53
    %v386 = vsel %vm385, 1, 0
    %v387 = vcvt.s32.f32 %v386
    %v388 = vpack.c.bf16 %v387, %v387
    %389 = vst [vmem:[#allocation2 + $0x52] sm:$0x3] %v388
    %390 = vset.pattern.permute.xlu0 42
    %391 = vperm.xlu0 %390, %v51
    %v392 = vpop.permute.xlu0 %391
    %vm393 = vcmp.eq.s32.totalorder %v392, %v53
    %v394 = vsel %vm393, 1, 0
    %v395 = vcvt.s32.f32 %v394
    %v396 = vpack.c.bf16 %v395, %v395
    %397 = vst [vmem:[#allocation2 + $0x54] sm:$0x3] %v396
    %398 = vset.pattern.permute.xlu0 43
    %399 = vperm.xlu0 %398, %v51
    %v400 = vpop.permute.xlu0 %399
    %vm401 = vcmp.eq.s32.totalorder %v400, %v53
    %v402 = vsel %vm401, 1, 0
    %v403 = vcvt.s32.f32 %v402
    %v404 = vpack.c.bf16 %v403, %v403
    %405 = vst [vmem:[#allocation2 + $0x56] sm:$0x3] %v404
    %406 = vset.pattern.permute.xlu0 44
    %407 = vperm.xlu0 %406, %v51
    %v408 = vpop.permute.xlu0 %407
    %vm409 = vcmp.eq.s32.totalorder %v408, %v53
    %v410 = vsel %vm409, 1, 0
    %v411 = vcvt.s32.f32 %v410
    %v412 = vpack.c.bf16 %v411, %v411
    %413 = vst [vmem:[#allocation2 + $0x58] sm:$0x3] %v412
    %414 = vset.pattern.permute.xlu0 45
    %415 = vperm.xlu0 %414, %v51
    %v416 = vpop.permute.xlu0 %415
    %vm417 = vcmp.eq.s32.totalorder %v416, %v53
    %v418 = vsel %vm417, 1, 0
    %v419 = vcvt.s32.f32 %v418
    %v420 = vpack.c.bf16 %v419, %v419
    %421 = vst [vmem:[#allocation2 + $0x5a] sm:$0x3] %v420
    %422 = vset.pattern.permute.xlu0 46
    %423 = vperm.xlu0 %422, %v51
    %v424 = vpop.permute.xlu0 %423
    %vm425 = vcmp.eq.s32.totalorder %v424, %v53
    %v426 = vsel %vm425, 1, 0
    %v427 = vcvt.s32.f32 %v426
    %v428 = vpack.c.bf16 %v427, %v427
    %429 = vst [vmem:[#allocation2 + $0x5c] sm:$0x3] %v428
    %430 = vset.pattern.permute.xlu0 47
    %431 = vperm.xlu0 %430, %v51
    %v432 = vpop.permute.xlu0 %431
    %vm433 = vcmp.eq.s32.totalorder %v432, %v53
    %v434 = vsel %vm433, 1, 0
    %v435 = vcvt.s32.f32 %v434
    %v436 = vpack.c.bf16 %v435, %v435
    %437 = vst [vmem:[#allocation2 + $0x5e] sm:$0x3] %v436
    %438 = vset.pattern.permute.xlu0 48
    %439 = vperm.xlu0 %438, %v51
    %v440 = vpop.permute.xlu0 %439
    %vm441 = vcmp.eq.s32.totalorder %v440, %v53
    %v442 = vsel %vm441, 1, 0
    %v443 = vcvt.s32.f32 %v442
    %v444 = vpack.c.bf16 %v443, %v443
    %445 = vst [vmem:[#allocation2 + $0x60] sm:$0x3] %v444
    %446 = vset.pattern.permute.xlu0 49
    %447 = vperm.xlu0 %446, %v51
    %v448 = vpop.permute.xlu0 %447
    %vm449 = vcmp.eq.s32.totalorder %v448, %v53
    %v450 = vsel %vm449, 1, 0
    %v451 = vcvt.s32.f32 %v450
    %v452 = vpack.c.bf16 %v451, %v451
    %453 = vst [vmem:[#allocation2 + $0x62] sm:$0x3] %v452
    %v454 = vld [vmem:[#allocation2] sm:$0xff]
    %v455 = vld [vmem:[#allocation2 + $0x8] sm:$0xff]
    %v456 = vld [vmem:[#allocation2 + $0x10] sm:$0xff]
    %v457 = vld [vmem:[#allocation2 + $0x18] sm:$0xff]
    %v458 = vld [vmem:[#allocation2 + $0x20] sm:$0xff]
    %v459 = vld [vmem:[#allocation2 + $0x28] sm:$0xff]
    %v460 = vld [vmem:[#allocation2 + $0x30] sm:$0xff]
    %v461 = vld [vmem:[#allocation2 + $0x38] sm:$0xff]
    %v462 = vld [vmem:[#allocation2 + $0x40] sm:$0xff]
    %v463 = vld [vmem:[#allocation2 + $0x48] sm:$0xff]
    %v464 = vld [vmem:[#allocation2 + $0x50] sm:$0xff]
    %v465 = vld [vmem:[#allocation2 + $0x58] sm:$0xff]
    %v466 = vld [vmem:[#allocation2 + $0x60] sm:$0xf]
    %v467 = vld [vmem:[#allocation6] sm:$0x77]
    %v468 = vld [vmem:[#allocation6 + $0x8] sm:$0x77]
    %v469 = vld [vmem:[#allocation6 + $0x10] sm:$0x77]
    %v470 = vld [vmem:[#allocation6 + $0x18] sm:$0x77]
    %v471 = vld [vmem:[#allocation6 + $0x20] sm:$0x77]
    %v472 = vld [vmem:[#allocation6 + $0x28] sm:$0x77]
    %v473 = vld [vmem:[#allocation6 + $0x30] sm:$0x77]
    %v474 = vld [vmem:[#allocation6 + $0x38] sm:$0x77]
    %v475 = vld [vmem:[#allocation6 + $0x40] sm:$0x77]
    %v476 = vld [vmem:[#allocation6 + $0x48] sm:$0x77]
    %v477 = vld [vmem:[#allocation6 + $0x50] sm:$0x77]
    %v478 = vld [vmem:[#allocation6 + $0x58] sm:$0x77]
    %v479 = vld [vmem:[#allocation6 + $0x60] sm:$0x77]
    %v480 = vld [vmem:[#allocation6 + $0x68] sm:$0x77]
    %v481 = vld [vmem:[#allocation6 + $0x70] sm:$0x77]
    %v482 = vld [vmem:[#allocation6 + $0x78] sm:$0x77]
    %v483 = vld [vmem:[#allocation6 + $0x80] sm:$0x77]
    %v484 = vld [vmem:[#allocation6 + $0x88] sm:$0x77]
    %v485 = vld [vmem:[#allocation6 + $0x90] sm:$0x77]
    %v486 = vld [vmem:[#allocation6 + $0x98] sm:$0x77]
    %v487 = vld [vmem:[#allocation6 + $0xa0] sm:$0x77]
    %v488 = vld [vmem:[#allocation6 + $0xa8] sm:$0x77]
    %v489 = vld [vmem:[#allocation6 + $0xb0] sm:$0x77]
    %v490 = vld [vmem:[#allocation6 + $0xb8] sm:$0x77]
    %v491 = vld [vmem:[#allocation6 + $0xc0] sm:$0x77]
    %v492 = vld [vmem:[#allocation8] sm:$0x1]
    %v494 = vlaneseq
    %v495 = vshrl.u32 %v494, 7
    %v496 = vsub.s32 0, %v495
    %v497 = vrot.slane %v492, %v496
    %v512 = vcombine.high %v454, %v454
    %v514 = vunpack.c.l.s4 1983009808
    %v515 = vunpack.c.0.s8 %v514
    %v516 = vlaneseq
    %v517 = vshrl.u32 %v516, 7
    %v518 = vsub.s32 %v515, %v517
    %v519 = vrot.slane %v454, %v518
    %v521 = vunpack.c.l.s4 1983009808
    %v522 = vunpack.c.0.s8 %v521
    %v523 = vlaneseq
    %v524 = vshrl.u32 %v523, 7
    %v525 = vsub.s32 %v522, %v524
    %v526 = vrot.slane %v512, %v525
    %v527 = vcombine.high %v519, %v519
    %v528 = vcombine.high %v526, %v526
    %v529 = vcombine.high %v455, %v455
    %v531 = vunpack.c.l.s4 1983009808
    %v532 = vunpack.c.0.s8 %v531
    %v533 = vlaneseq
    %v534 = vshrl.u32 %v533, 7
    %v535 = vsub.s32 %v532, %v534
    %v536 = vrot.slane %v455, %v535
    %v538 = vunpack.c.l.s4 1983009808
    %v539 = vunpack.c.0.s8 %v538
    %v540 = vlaneseq
    %v541 = vshrl.u32 %v540, 7
    %v542 = vsub.s32 %v539, %v541
    %v543 = vrot.slane %v529, %v542
    %v544 = vcombine.high %v536, %v536
    %v545 = vcombine.high %v543, %v543
    %v546 = vcombine.high %v456, %v456
    %v548 = vunpack.c.l.s4 1983009808
    %v549 = vunpack.c.0.s8 %v548
    %v550 = vlaneseq
    %v551 = vshrl.u32 %v550, 7
    %v552 = vsub.s32 %v549, %v551
    %v553 = vrot.slane %v456, %v552
    %v555 = vunpack.c.l.s4 1983009808
    %v556 = vunpack.c.0.s8 %v555
    %v557 = vlaneseq
    %v558 = vshrl.u32 %v557, 7
    %v559 = vsub.s32 %v556, %v558
    %v560 = vrot.slane %v546, %v559
    %v561 = vcombine.high %v553, %v553
    %v562 = vcombine.high %v560, %v560
    %v563 = vcombine.high %v457, %v457
    %v565 = vunpack.c.l.s4 1983009808
    %v566 = vunpack.c.0.s8 %v565
    %v567 = vlaneseq
    %v568 = vshrl.u32 %v567, 7
    %v569 = vsub.s32 %v566, %v568
    %v570 = vrot.slane %v457, %v569
    %v572 = vunpack.c.l.s4 1983009808
    %v573 = vunpack.c.0.s8 %v572
    %v574 = vlaneseq
    %v575 = vshrl.u32 %v574, 7
    %v576 = vsub.s32 %v573, %v575
    %v577 = vrot.slane %v563, %v576
    %v578 = vcombine.high %v570, %v570
    %v579 = vcombine.high %v577, %v577
    %v580 = vcombine.high %v458, %v458
    %v582 = vunpack.c.l.s4 1983009808
    %v583 = vunpack.c.0.s8 %v582
    %v584 = vlaneseq
    %v585 = vshrl.u32 %v584, 7
    %v586 = vsub.s32 %v583, %v585
    %v587 = vrot.slane %v458, %v586
    %v589 = vunpack.c.l.s4 1983009808
    %v590 = vunpack.c.0.s8 %v589
    %v591 = vlaneseq
    %v592 = vshrl.u32 %v591, 7
    %v593 = vsub.s32 %v590, %v592
    %v594 = vrot.slane %v580, %v593
    %v595 = vcombine.high %v587, %v587
    %v596 = vcombine.high %v594, %v594
    %v597 = vcombine.high %v459, %v459
    %v599 = vunpack.c.l.s4 1983009808
    %v600 = vunpack.c.0.s8 %v599
    %v601 = vlaneseq
    %v602 = vshrl.u32 %v601, 7
    %v603 = vsub.s32 %v600, %v602
    %v604 = vrot.slane %v459, %v603
    %v606 = vunpack.c.l.s4 1983009808
    %v607 = vunpack.c.0.s8 %v606
    %v608 = vlaneseq
    %v609 = vshrl.u32 %v608, 7
    %v610 = vsub.s32 %v607, %v609
    %v611 = vrot.slane %v597, %v610
    %v612 = vcombine.high %v604, %v604
    %v613 = vcombine.high %v611, %v611
    %v614 = vcombine.high %v460, %v460
    %v616 = vunpack.c.l.s4 1983009808
    %v617 = vunpack.c.0.s8 %v616
    %v618 = vlaneseq
    %v619 = vshrl.u32 %v618, 7
    %v620 = vsub.s32 %v617, %v619
    %v621 = vrot.slane %v460, %v620
    %v623 = vunpack.c.l.s4 1983009808
    %v624 = vunpack.c.0.s8 %v623
    %v625 = vlaneseq
    %v626 = vshrl.u32 %v625, 7
    %v627 = vsub.s32 %v624, %v626
    %v628 = vrot.slane %v614, %v627
    %v629 = vcombine.high %v621, %v621
    %v630 = vcombine.high %v628, %v628
    %v631 = vcombine.high %v461, %v461
    %v633 = vunpack.c.l.s4 1983009808
    %v634 = vunpack.c.0.s8 %v633
    %v635 = vlaneseq
    %v636 = vshrl.u32 %v635, 7
    %v637 = vsub.s32 %v634, %v636
    %v638 = vrot.slane %v461, %v637
    %v640 = vunpack.c.l.s4 1983009808
    %v641 = vunpack.c.0.s8 %v640
    %v642 = vlaneseq
    %v643 = vshrl.u32 %v642, 7
    %v644 = vsub.s32 %v641, %v643
    %v645 = vrot.slane %v631, %v644
    %v646 = vcombine.high %v638, %v638
    %v647 = vcombine.high %v645, %v645
    %v648 = vcombine.high %v462, %v462
    %v650 = vunpack.c.l.s4 1983009808
    %v651 = vunpack.c.0.s8 %v650
    %v652 = vlaneseq
    %v653 = vshrl.u32 %v652, 7
    %v654 = vsub.s32 %v651, %v653
    %v655 = vrot.slane %v462, %v654
    %v657 = vunpack.c.l.s4 1983009808
    %v658 = vunpack.c.0.s8 %v657
    %v659 = vlaneseq
    %v660 = vshrl.u32 %v659, 7
    %v661 = vsub.s32 %v658, %v660
    %v662 = vrot.slane %v648, %v661
    %v663 = vcombine.high %v655, %v655
    %v664 = vcombine.high %v662, %v662
    %v665 = vcombine.high %v463, %v463
    %v667 = vunpack.c.l.s4 1983009808
    %v668 = vunpack.c.0.s8 %v667
    %v669 = vlaneseq
    %v670 = vshrl.u32 %v669, 7
    %v671 = vsub.s32 %v668, %v670
    %v672 = vrot.slane %v463, %v671
    %v674 = vunpack.c.l.s4 1983009808
    %v675 = vunpack.c.0.s8 %v674
    %v676 = vlaneseq
    %v677 = vshrl.u32 %v676, 7
    %v678 = vsub.s32 %v675, %v677
    %v679 = vrot.slane %v665, %v678
    %v680 = vcombine.high %v672, %v672
    %v681 = vcombine.high %v679, %v679
    %v682 = vcombine.high %v464, %v464
    %v684 = vunpack.c.l.s4 1983009808
    %v685 = vunpack.c.0.s8 %v684
    %v686 = vlaneseq
    %v687 = vshrl.u32 %v686, 7
    %v688 = vsub.s32 %v685, %v687
    %v689 = vrot.slane %v464, %v688
    %v691 = vunpack.c.l.s4 1983009808
    %v692 = vunpack.c.0.s8 %v691
    %v693 = vlaneseq
    %v694 = vshrl.u32 %v693, 7
    %v695 = vsub.s32 %v692, %v694
    %v696 = vrot.slane %v682, %v695
    %v697 = vcombine.high %v689, %v689
    %v698 = vcombine.high %v696, %v696
    %v699 = vcombine.high %v465, %v465
    %v701 = vunpack.c.l.s4 1983009808
    %v702 = vunpack.c.0.s8 %v701
    %v703 = vlaneseq
    %v704 = vshrl.u32 %v703, 7
    %v705 = vsub.s32 %v702, %v704
    %v706 = vrot.slane %v465, %v705
    %v708 = vunpack.c.l.s4 1983009808
    %v709 = vunpack.c.0.s8 %v708
    %v710 = vlaneseq
    %v711 = vshrl.u32 %v710, 7
    %v712 = vsub.s32 %v709, %v711
    %v713 = vrot.slane %v699, %v712
    %v714 = vcombine.high %v706, %v706
    %v715 = vcombine.high %v713, %v713
    %v717 = vunpack.c.l.s4 1983009808
    %v718 = vunpack.c.0.s8 %v717
    %v719 = vlaneseq
    %v720 = vshrl.u32 %v719, 7
    %v721 = vsub.s32 %v718, %v720
    %v722 = vrot.slane %v466, %v721
    %v723 = vcombine.high %v722, %v722
    %v799 = vunpack.c.l.b16 %v467
    %v800 = vunpack.c.h.b16 %v467
    %v801 = vunpack.c.l.b16 %v468
    %v802 = vunpack.c.h.b16 %v468
    %v803 = vunpack.c.l.b16 %v469
    %v804 = vunpack.c.h.b16 %v469
    %v805 = vunpack.c.l.b16 %v470
    %v806 = vunpack.c.h.b16 %v470
    %v807 = vunpack.c.l.b16 %v471
    %v808 = vunpack.c.h.b16 %v471
    %v809 = vunpack.c.l.b16 %v472
    %v810 = vunpack.c.h.b16 %v472
    %v811 = vunpack.c.l.b16 %v473
    %v812 = vunpack.c.h.b16 %v473
    %v813 = vunpack.c.l.b16 %v474
    %v814 = vunpack.c.h.b16 %v474
    %v815 = vunpack.c.l.b16 %v475
    %v816 = vunpack.c.h.b16 %v475
    %v817 = vunpack.c.l.b16 %v476
    %v818 = vunpack.c.h.b16 %v476
    %v819 = vunpack.c.l.b16 %v477
    %v820 = vunpack.c.h.b16 %v477
    %v821 = vunpack.c.l.b16 %v478
    %v822 = vunpack.c.h.b16 %v478
    %v823 = vunpack.c.l.b16 %v479
    %v824 = vunpack.c.h.b16 %v479
    %v825 = vunpack.c.l.b16 %v480
    %v826 = vunpack.c.h.b16 %v480
    %v827 = vunpack.c.l.b16 %v481
    %v828 = vunpack.c.h.b16 %v481
    %v829 = vunpack.c.l.b16 %v482
    %v830 = vunpack.c.h.b16 %v482
    %v831 = vunpack.c.l.b16 %v483
    %v832 = vunpack.c.h.b16 %v483
    %v833 = vunpack.c.l.b16 %v484
    %v834 = vunpack.c.h.b16 %v484
    %v835 = vunpack.c.l.b16 %v485
    %v836 = vunpack.c.h.b16 %v485
    %v837 = vunpack.c.l.b16 %v486
    %v838 = vunpack.c.h.b16 %v486
    %v839 = vunpack.c.l.b16 %v487
    %v840 = vunpack.c.h.b16 %v487
    %v841 = vunpack.c.l.b16 %v488
    %v842 = vunpack.c.h.b16 %v488
    %v843 = vunpack.c.l.b16 %v489
    %v844 = vunpack.c.h.b16 %v489
    %v845 = vunpack.c.l.b16 %v490
    %v846 = vunpack.c.h.b16 %v490
    %v847 = vunpack.c.l.b16 %v491
    %v848 = vunpack.c.h.b16 %v491
    %v849 = vpack.c.b16 %v799, %v799
    %v850 = vpack.c.b16 %v800, %v800
    %v851 = vpack.c.b16 %v801, %v801
    %v852 = vpack.c.b16 %v802, %v802
    %v853 = vpack.c.b16 %v803, %v803
    %v854 = vpack.c.b16 %v804, %v804
    %v855 = vpack.c.b16 %v805, %v805
    %v856 = vpack.c.b16 %v806, %v806
    %v857 = vpack.c.b16 %v807, %v807
    %v858 = vpack.c.b16 %v808, %v808
    %v859 = vpack.c.b16 %v809, %v809
    %v860 = vpack.c.b16 %v810, %v810
    %v861 = vpack.c.b16 %v811, %v811
    %v862 = vpack.c.b16 %v812, %v812
    %v863 = vpack.c.b16 %v813, %v813
    %v864 = vpack.c.b16 %v814, %v814
    %v865 = vpack.c.b16 %v815, %v815
    %v866 = vpack.c.b16 %v816, %v816
    %v867 = vpack.c.b16 %v817, %v817
    %v868 = vpack.c.b16 %v818, %v818
    %v869 = vpack.c.b16 %v819, %v819
    %v870 = vpack.c.b16 %v820, %v820
    %v871 = vpack.c.b16 %v821, %v821
    %v872 = vpack.c.b16 %v822, %v822
    %v873 = vpack.c.b16 %v823, %v823
    %v874 = vpack.c.b16 %v824, %v824
    %v875 = vpack.c.b16 %v825, %v825
    %v876 = vpack.c.b16 %v826, %v826
    %v877 = vpack.c.b16 %v827, %v827
    %v878 = vpack.c.b16 %v828, %v828
    %v879 = vpack.c.b16 %v829, %v829
    %v880 = vpack.c.b16 %v830, %v830
    %v881 = vpack.c.b16 %v831, %v831
    %v882 = vpack.c.b16 %v832, %v832
    %v883 = vpack.c.b16 %v833, %v833
    %v884 = vpack.c.b16 %v834, %v834
    %v885 = vpack.c.b16 %v835, %v835
    %v886 = vpack.c.b16 %v836, %v836
    %v887 = vpack.c.b16 %v837, %v837
    %v888 = vpack.c.b16 %v838, %v838
    %v889 = vpack.c.b16 %v839, %v839
    %v890 = vpack.c.b16 %v840, %v840
    %v891 = vpack.c.b16 %v841, %v841
    %v892 = vpack.c.b16 %v842, %v842
    %v893 = vpack.c.b16 %v843, %v843
    %v894 = vpack.c.b16 %v844, %v844
    %v895 = vpack.c.b16 %v845, %v845
    %v896 = vpack.c.b16 %v846, %v846
    %v897 = vpack.c.b16 %v847, %v847
    %v898 = vpack.c.b16 %v848, %v848
    %949 = vmatprep.subr.bf16.mxu0 0
    %950 = vmatpush1.bf16.xpose.msra.mxu0 0
    %951 = vmatprep.subr.bf16.mxu0 0
    %952 = vmatpush1.bf16.xpose.msra.mxu0 0
    %953 = vmatprep.subr.bf16.mxu0 0
    %954 = vmatpush1.bf16.xpose.msra.mxu0 0
    %955 = vmatprep.subr.bf16.mxu0 0
    %956 = vmatpush1.bf16.xpose.msra.mxu0 0
    %957 = vmatprep.subr.bf16.mxu0 0
    %958 = vmatpush1.bf16.xpose.msra.mxu0 0
    %959 = vmatprep.subr.bf16.mxu0 0
    %960 = vmatpush1.bf16.xpose.msra.mxu0 0
    %961 = vmatprep.subr.bf16.mxu0 0
    %962 = vmatpush1.bf16.xpose.msra.mxu0 0
    %963 = vmatprep.subr.bf16.mxu0 %v850
    %964 = vmatpush1.bf16.xpose.msra.mxu0 %v849
    %965 = vmatprep.subr.bf16.mxu0 0
    %966 = vmatpush2.bf16.xpose.msra.mxu0 0
    %967 = vmatprep.subr.bf16.mxu0 0
    %968 = vmatpush2.bf16.xpose.msra.mxu0 0
    %969 = vmatprep.subr.bf16.mxu0 0
    %970 = vmatpush2.bf16.xpose.msra.mxu0 0
    %971 = vmatprep.subr.bf16.mxu0 0
    %972 = vmatpush2.bf16.xpose.msra.mxu0 0
    %973 = vmatprep.subr.bf16.mxu0 0
    %974 = vmatpush2.bf16.xpose.msra.mxu0 0
    %975 = vmatprep.subr.bf16.mxu0 0
    %976 = vmatpush2.bf16.xpose.msra.mxu0 0
    %977 = vmatprep.subr.bf16.mxu0 0
    %978 = vmatpush2.bf16.xpose.msra.mxu0 0
    %979 = vmatprep.subr.bf16.mxu0 0
    %980 = vmatpush2.bf16.xpose.msra.mxu0 0
    %981 = vmatprep.mubr.bf16.mxu0 %v527
    %982 = vmatmul.mubr.bf16.gmra.mxu0 %v519
    %v983 = vpop.f32.mrf.mxu0
    %v984 = vadd.f32 %v497, %v983
    %v985 = vpop.f32.mrf.mxu0
    %v986 = vpop.f32.mrf.mxu0
    %v987 = vpop.f32.mrf.mxu0
    %988 = vdwg.mxu0
    %989 = vmatprep.subr.bf16.mxu0 0
    %990 = vmatpush1.bf16.xpose.msra.mxu0 0
    %991 = vmatprep.subr.bf16.mxu0 0
    %992 = vmatpush1.bf16.xpose.msra.mxu0 0
    %993 = vmatprep.subr.bf16.mxu0 0
    %994 = vmatpush1.bf16.xpose.msra.mxu0 0
    %995 = vmatprep.subr.bf16.mxu0 0
    %996 = vmatpush1.bf16.xpose.msra.mxu0 0
    %997 = vmatprep.subr.bf16.mxu0 0
    %998 = vmatpush1.bf16.xpose.msra.mxu0 0
    %999 = vmatprep.subr.bf16.mxu0 0
    %1000 = vmatpush1.bf16.xpose.msra.mxu0 0
    %1001 = vmatprep.subr.bf16.mxu0 0
    %1002 = vmatpush1.bf16.xpose.msra.mxu0 0
    %1003 = vmatprep.subr.bf16.mxu0 %v852
    %1004 = vmatpush1.bf16.xpose.msra.mxu0 %v851
    %1005 = vmatprep.subr.bf16.mxu0 0
    %1006 = vmatpush2.bf16.xpose.msra.mxu0 0
    %1007 = vmatprep.subr.bf16.mxu0 0
    %1008 = vmatpush2.bf16.xpose.msra.mxu0 0
    %1009 = vmatprep.subr.bf16.mxu0 0
    %1010 = vmatpush2.bf16.xpose.msra.mxu0 0
    %1011 = vmatprep.subr.bf16.mxu0 0
    %1012 = vmatpush2.bf16.xpose.msra.mxu0 0
    %1013 = vmatprep.subr.bf16.mxu0 0
    %1014 = vmatpush2.bf16.xpose.msra.mxu0 0
    %1015 = vmatprep.subr.bf16.mxu0 0
    %1016 = vmatpush2.bf16.xpose.msra.mxu0 0
    %1017 = vmatprep.subr.bf16.mxu0 0
    %1018 = vmatpush2.bf16.xpose.msra.mxu0 0
    %1019 = vmatprep.subr.bf16.mxu0 0
    %1020 = vmatpush2.bf16.xpose.msra.mxu0 0
    %1021 = vmatprep.mubr.bf16.mxu0 %v528
    %1022 = vmatmul.mubr.bf16.gmra.mxu0 %v526
    %v1023 = vpop.f32.mrf.mxu0
    %v1024 = vadd.f32 %v984, %v1023
    %v1025 = vpop.f32.mrf.mxu0
    %v1026 = vpop.f32.mrf.mxu0
    %v1027 = vpop.f32.mrf.mxu0
    %1028 = vdwg.mxu0
    %1029 = vmatprep.subr.bf16.mxu0 0
    %1030 = vmatpush1.bf16.xpose.msra.mxu0 0
    %1031 = vmatprep.subr.bf16.mxu0 0
    %1032 = vmatpush1.bf16.xpose.msra.mxu0 0
    %1033 = vmatprep.subr.bf16.mxu0 0
    %1034 = vmatpush1.bf16.xpose.msra.mxu0 0
    %1035 = vmatprep.subr.bf16.mxu0 0
    %1036 = vmatpush1.bf16.xpose.msra.mxu0 0
    %1037 = vmatprep.subr.bf16.mxu0 0
    %1038 = vmatpush1.bf16.xpose.msra.mxu0 0
    %1039 = vmatprep.subr.bf16.mxu0 0
    %1040 = vmatpush1.bf16.xpose.msra.mxu0 0
    %1041 = vmatprep.subr.bf16.mxu0 0
    %1042 = vmatpush1.bf16.xpose.msra.mxu0 0
    %1043 = vmatprep.subr.bf16.mxu0 %v854
    %1044 = vmatpush1.bf16.xpose.msra.mxu0 %v853
    %1045 = vmatprep.subr.bf16.mxu0 0
    %1046 = vmatpush2.bf16.xpose.msra.mxu0 0
    %1047 = vmatprep.subr.bf16.mxu0 0
    %1048 = vmatpush2.bf16.xpose.msra.mxu0 0
    %1049 = vmatprep.subr.bf16.mxu0 0
    %1050 = vmatpush2.bf16.xpose.msra.mxu0 0
    %1051 = vmatprep.subr.bf16.mxu0 0
    %1052 = vmatpush2.bf16.xpose.msra.mxu0 0
    %1053 = vmatprep.subr.bf16.mxu0 0
    %1054 = vmatpush2.bf16.xpose.msra.mxu0 0
    %1055 = vmatprep.subr.bf16.mxu0 0
    %1056 = vmatpush2.bf16.xpose.msra.mxu0 0
    %1057 = vmatprep.subr.bf16.mxu0 0
    %1058 = vmatpush2.bf16.xpose.msra.mxu0 0
    %1059 = vmatprep.subr.bf16.mxu0 0
    %1060 = vmatpush2.bf16.xpose.msra.mxu0 0
    %1061 = vmatprep.mubr.bf16.mxu0 %v544
    %1062 = vmatmul.mubr.bf16.gmra.mxu0 %v536
    %v1063 = vpop.f32.mrf.mxu0
    %v1064 = vadd.f32 %v1024, %v1063
    %v1065 = vpop.f32.mrf.mxu0
    %v1066 = vpop.f32.mrf.mxu0
    %v1067 = vpop.f32.mrf.mxu0
    %1068 = vdwg.mxu0
    %1069 = vmatprep.subr.bf16.mxu0 0
    %1070 = vmatpush1.bf16.xpose.msra.mxu0 0
    %1071 = vmatprep.subr.bf16.mxu0 0
    %1072 = vmatpush1.bf16.xpose.msra.mxu0 0
    %1073 = vmatprep.subr.bf16.mxu0 0
    %1074 = vmatpush1.bf16.xpose.msra.mxu0 0
    %1075 = vmatprep.subr.bf16.mxu0 0
    %1076 = vmatpush1.bf16.xpose.msra.mxu0 0
    %1077 = vmatprep.subr.bf16.mxu0 0
    %1078 = vmatpush1.bf16.xpose.msra.mxu0 0
    %1079 = vmatprep.subr.bf16.mxu0 0
    %1080 = vmatpush1.bf16.xpose.msra.mxu0 0
    %1081 = vmatprep.subr.bf16.mxu0 0
    %1082 = vmatpush1.bf16.xpose.msra.mxu0 0
    %1083 = vmatprep.subr.bf16.mxu0 %v856
    %1084 = vmatpush1.bf16.xpose.msra.mxu0 %v855
    %1085 = vmatprep.subr.bf16.mxu0 0
    %1086 = vmatpush2.bf16.xpose.msra.mxu0 0
    %1087 = vmatprep.subr.bf16.mxu0 0
    %1088 = vmatpush2.bf16.xpose.msra.mxu0 0
    %1089 = vmatprep.subr.bf16.mxu0 0
    %1090 = vmatpush2.bf16.xpose.msra.mxu0 0
    %1091 = vmatprep.subr.bf16.mxu0 0
    %1092 = vmatpush2.bf16.xpose.msra.mxu0 0
    %1093 = vmatprep.subr.bf16.mxu0 0
    %1094 = vmatpush2.bf16.xpose.msra.mxu0 0
    %1095 = vmatprep.subr.bf16.mxu0 0
    %1096 = vmatpush2.bf16.xpose.msra.mxu0 0
    %1097 = vmatprep.subr.bf16.mxu0 0
    %1098 = vmatpush2.bf16.xpose.msra.mxu0 0
    %1099 = vmatprep.subr.bf16.mxu0 0
    %1100 = vmatpush2.bf16.xpose.msra.mxu0 0
    %1101 = vmatprep.mubr.bf16.mxu0 %v545
    %1102 = vmatmul.mubr.bf16.gmra.mxu0 %v543
    %v1103 = vpop.f32.mrf.mxu0
    %v1104 = vadd.f32 %v1064, %v1103
    %v1105 = vpop.f32.mrf.mxu0
    %v1106 = vpop.f32.mrf.mxu0
    %v1107 = vpop.f32.mrf.mxu0
    %1108 = vdwg.mxu0
    %1109 = vmatprep.subr.bf16.mxu0 0
    %1110 = vmatpush1.bf16.xpose.msra.mxu0 0
    %1111 = vmatprep.subr.bf16.mxu0 0
    %1112 = vmatpush1.bf16.xpose.msra.mxu0 0
    %1113 = vmatprep.subr.bf16.mxu0 0
    %1114 = vmatpush1.bf16.xpose.msra.mxu0 0
    %1115 = vmatprep.subr.bf16.mxu0 0
    %1116 = vmatpush1.bf16.xpose.msra.mxu0 0
    %1117 = vmatprep.subr.bf16.mxu0 0
    %1118 = vmatpush1.bf16.xpose.msra.mxu0 0
    %1119 = vmatprep.subr.bf16.mxu0 0
    %1120 = vmatpush1.bf16.xpose.msra.mxu0 0
    %1121 = vmatprep.subr.bf16.mxu0 0
    %1122 = vmatpush1.bf16.xpose.msra.mxu0 0
    %1123 = vmatprep.subr.bf16.mxu0 %v858
    %1124 = vmatpush1.bf16.xpose.msra.mxu0 %v857
    %1125 = vmatprep.subr.bf16.mxu0 0
    %1126 = vmatpush2.bf16.xpose.msra.mxu0 0
    %1127 = vmatprep.subr.bf16.mxu0 0
    %1128 = vmatpush2.bf16.xpose.msra.mxu0 0
    %1129 = vmatprep.subr.bf16.mxu0 0
    %1130 = vmatpush2.bf16.xpose.msra.mxu0 0
    %1131 = vmatprep.subr.bf16.mxu0 0
    %1132 = vmatpush2.bf16.xpose.msra.mxu0 0
    %1133 = vmatprep.subr.bf16.mxu0 0
    %1134 = vmatpush2.bf16.xpose.msra.mxu0 0
    %1135 = vmatprep.subr.bf16.mxu0 0
    %1136 = vmatpush2.bf16.xpose.msra.mxu0 0
    %1137 = vmatprep.subr.bf16.mxu0 0
    %1138 = vmatpush2.bf16.xpose.msra.mxu0 0
    %1139 = vmatprep.subr.bf16.mxu0 0
    %1140 = vmatpush2.bf16.xpose.msra.mxu0 0
    %1141 = vmatprep.mubr.bf16.mxu0 %v561
    %1142 = vmatmul.mubr.bf16.gmra.mxu0 %v553
    %v1143 = vpop.f32.mrf.mxu0
    %v1144 = vadd.f32 %v1104, %v1143
    %v1145 = vpop.f32.mrf.mxu0
    %v1146 = vpop.f32.mrf.mxu0
    %v1147 = vpop.f32.mrf.mxu0
    %1148 = vdwg.mxu0
    %1149 = vmatprep.subr.bf16.mxu0 0
    %1150 = vmatpush1.bf16.xpose.msra.mxu0 0
    %1151 = vmatprep.subr.bf16.mxu0 0
    %1152 = vmatpush1.bf16.xpose.msra.mxu0 0
    %1153 = vmatprep.subr.bf16.mxu0 0
    %1154 = vmatpush1.bf16.xpose.msra.mxu0 0
    %1155 = vmatprep.subr.bf16.mxu0 0
    %1156 = vmatpush1.bf16.xpose.msra.mxu0 0
    %1157 = vmatprep.subr.bf16.mxu0 0
    %1158 = vmatpush1.bf16.xpose.msra.mxu0 0
    %1159 = vmatprep.subr.bf16.mxu0 0
    %1160 = vmatpush1.bf16.xpose.msra.mxu0 0
    %1161 = vmatprep.subr.bf16.mxu0 0
    %1162 = vmatpush1.bf16.xpose.msra.mxu0 0
    %1163 = vmatprep.subr.bf16.mxu0 %v860
    %1164 = vmatpush1.bf16.xpose.msra.mxu0 %v859
    %1165 = vmatprep.subr.bf16.mxu0 0
    %1166 = vmatpush2.bf16.xpose.msra.mxu0 0
    %1167 = vmatprep.subr.bf16.mxu0 0
    %1168 = vmatpush2.bf16.xpose.msra.mxu0 0
    %1169 = vmatprep.subr.bf16.mxu0 0
    %1170 = vmatpush2.bf16.xpose.msra.mxu0 0
    %1171 = vmatprep.subr.bf16.mxu0 0
    %1172 = vmatpush2.bf16.xpose.msra.mxu0 0
    %1173 = vmatprep.subr.bf16.mxu0 0
    %1174 = vmatpush2.bf16.xpose.msra.mxu0 0
    %1175 = vmatprep.subr.bf16.mxu0 0
    %1176 = vmatpush2.bf16.xpose.msra.mxu0 0
    %1177 = vmatprep.subr.bf16.mxu0 0
    %1178 = vmatpush2.bf16.xpose.msra.mxu0 0
    %1179 = vmatprep.subr.bf16.mxu0 0
    %1180 = vmatpush2.bf16.xpose.msra.mxu0 0
    %1181 = vmatprep.mubr.bf16.mxu0 %v562
    %1182 = vmatmul.mubr.bf16.gmra.mxu0 %v560
    %v1183 = vpop.f32.mrf.mxu0
    %v1184 = vadd.f32 %v1144, %v1183
    %v1185 = vpop.f32.mrf.mxu0
    %v1186 = vpop.f32.mrf.mxu0
    %v1187 = vpop.f32.mrf.mxu0
    %1188 = vdwg.mxu0
    %1189 = vmatprep.subr.bf16.mxu0 0
    %1190 = vmatpush1.bf16.xpose.msra.mxu0 0
    %1191 = vmatprep.subr.bf16.mxu0 0
    %1192 = vmatpush1.bf16.xpose.msra.mxu0 0
    %1193 = vmatprep.subr.bf16.mxu0 0
    %1194 = vmatpush1.bf16.xpose.msra.mxu0 0
    %1195 = vmatprep.subr.bf16.mxu0 0
    %1196 = vmatpush1.bf16.xpose.msra.mxu0 0
    %1197 = vmatprep.subr.bf16.mxu0 0
    %1198 = vmatpush1.bf16.xpose.msra.mxu0 0
    %1199 = vmatprep.subr.bf16.mxu0 0
    %1200 = vmatpush1.bf16.xpose.msra.mxu0 0
    %1201 = vmatprep.subr.bf16.mxu0 0
    %1202 = vmatpush1.bf16.xpose.msra.mxu0 0
    %1203 = vmatprep.subr.bf16.mxu0 %v862
    %1204 = vmatpush1.bf16.xpose.msra.mxu0 %v861
    %1205 = vmatprep.subr.bf16.mxu0 0
    %1206 = vmatpush2.bf16.xpose.msra.mxu0 0
    %1207 = vmatprep.subr.bf16.mxu0 0
    %1208 = vmatpush2.bf16.xpose.msra.mxu0 0
    %1209 = vmatprep.subr.bf16.mxu0 0
    %1210 = vmatpush2.bf16.xpose.msra.mxu0 0
    %1211 = vmatprep.subr.bf16.mxu0 0
    %1212 = vmatpush2.bf16.xpose.msra.mxu0 0
    %1213 = vmatprep.subr.bf16.mxu0 0
    %1214 = vmatpush2.bf16.xpose.msra.mxu0 0
    %1215 = vmatprep.subr.bf16.mxu0 0
    %1216 = vmatpush2.bf16.xpose.msra.mxu0 0
    %1217 = vmatprep.subr.bf16.mxu0 0
    %1218 = vmatpush2.bf16.xpose.msra.mxu0 0
    %1219 = vmatprep.subr.bf16.mxu0 0
    %1220 = vmatpush2.bf16.xpose.msra.mxu0 0
    %1221 = vmatprep.mubr.bf16.mxu0 %v578
    %1222 = vmatmul.mubr.bf16.gmra.mxu0 %v570
    %v1223 = vpop.f32.mrf.mxu0
    %v1224 = vadd.f32 %v1184, %v1223
    %v1225 = vpop.f32.mrf.mxu0
    %v1226 = vpop.f32.mrf.mxu0
    %v1227 = vpop.f32.mrf.mxu0
    %1228 = vdwg.mxu0
    %1229 = vmatprep.subr.bf16.mxu0 0
    %1230 = vmatpush1.bf16.xpose.msra.mxu0 0
    %1231 = vmatprep.subr.bf16.mxu0 0
    %1232 = vmatpush1.bf16.xpose.msra.mxu0 0
    %1233 = vmatprep.subr.bf16.mxu0 0
    %1234 = vmatpush1.bf16.xpose.msra.mxu0 0
    %1235 = vmatprep.subr.bf16.mxu0 0
    %1236 = vmatpush1.bf16.xpose.msra.mxu0 0
    %1237 = vmatprep.subr.bf16.mxu0 0
    %1238 = vmatpush1.bf16.xpose.msra.mxu0 0
    %1239 = vmatprep.subr.bf16.mxu0 0
    %1240 = vmatpush1.bf16.xpose.msra.mxu0 0
    %1241 = vmatprep.subr.bf16.mxu0 0
    %1242 = vmatpush1.bf16.xpose.msra.mxu0 0
    %1243 = vmatprep.subr.bf16.mxu0 %v864
    %1244 = vmatpush1.bf16.xpose.msra.mxu0 %v863
    %1245 = vmatprep.subr.bf16.mxu0 0
    %1246 = vmatpush2.bf16.xpose.msra.mxu0 0
    %1247 = vmatprep.subr.bf16.mxu0 0
    %1248 = vmatpush2.bf16.xpose.msra.mxu0 0
    %1249 = vmatprep.subr.bf16.mxu0 0
    %1250 = vmatpush2.bf16.xpose.msra.mxu0 0
    %1251 = vmatprep.subr.bf16.mxu0 0
    %1252 = vmatpush2.bf16.xpose.msra.mxu0 0
    %1253 = vmatprep.subr.bf16.mxu0 0
    %1254 = vmatpush2.bf16.xpose.msra.mxu0 0
    %1255 = vmatprep.subr.bf16.mxu0 0
    %1256 = vmatpush2.bf16.xpose.msra.mxu0 0
    %1257 = vmatprep.subr.bf16.mxu0 0
    %1258 = vmatpush2.bf16.xpose.msra.mxu0 0
    %1259 = vmatprep.subr.bf16.mxu0 0
    %1260 = vmatpush2.bf16.xpose.msra.mxu0 0
    %1261 = vmatprep.mubr.bf16.mxu0 %v579
    %1262 = vmatmul.mubr.bf16.gmra.mxu0 %v577
    %v1263 = vpop.f32.mrf.mxu0
    %v1264 = vadd.f32 %v1224, %v1263
    %v1265 = vpop.f32.mrf.mxu0
    %v1266 = vpop.f32.mrf.mxu0
    %v1267 = vpop.f32.mrf.mxu0
    %1268 = vdwg.mxu0
    %1269 = vmatprep.subr.bf16.mxu0 0
    %1270 = vmatpush1.bf16.xpose.msra.mxu0 0
    %1271 = vmatprep.subr.bf16.mxu0 0
    %1272 = vmatpush1.bf16.xpose.msra.mxu0 0
    %1273 = vmatprep.subr.bf16.mxu0 0
    %1274 = vmatpush1.bf16.xpose.msra.mxu0 0
    %1275 = vmatprep.subr.bf16.mxu0 0
    %1276 = vmatpush1.bf16.xpose.msra.mxu0 0
    %1277 = vmatprep.subr.bf16.mxu0 0
    %1278 = vmatpush1.bf16.xpose.msra.mxu0 0
    %1279 = vmatprep.subr.bf16.mxu0 0
    %1280 = vmatpush1.bf16.xpose.msra.mxu0 0
    %1281 = vmatprep.subr.bf16.mxu0 0
    %1282 = vmatpush1.bf16.xpose.msra.mxu0 0
    %1283 = vmatprep.subr.bf16.mxu0 %v866
    %1284 = vmatpush1.bf16.xpose.msra.mxu0 %v865
    %1285 = vmatprep.subr.bf16.mxu0 0
    %1286 = vmatpush2.bf16.xpose.msra.mxu0 0
    %1287 = vmatprep.subr.bf16.mxu0 0
    %1288 = vmatpush2.bf16.xpose.msra.mxu0 0
    %1289 = vmatprep.subr.bf16.mxu0 0
    %1290 = vmatpush2.bf16.xpose.msra.mxu0 0
    %1291 = vmatprep.subr.bf16.mxu0 0
    %1292 = vmatpush2.bf16.xpose.msra.mxu0 0
    %1293 = vmatprep.subr.bf16.mxu0 0
    %1294 = vmatpush2.bf16.xpose.msra.mxu0 0
    %1295 = vmatprep.subr.bf16.mxu0 0
    %1296 = vmatpush2.bf16.xpose.msra.mxu0 0
    %1297 = vmatprep.subr.bf16.mxu0 0
    %1298 = vmatpush2.bf16.xpose.msra.mxu0 0
    %1299 = vmatprep.subr.bf16.mxu0 0
    %1300 = vmatpush2.bf16.xpose.msra.mxu0 0
    %1301 = vmatprep.mubr.bf16.mxu0 %v595
    %1302 = vmatmul.mubr.bf16.gmra.mxu0 %v587
    %v1303 = vpop.f32.mrf.mxu0
    %v1304 = vadd.f32 %v1264, %v1303
    %v1305 = vpop.f32.mrf.mxu0
    %v1306 = vpop.f32.mrf.mxu0
    %v1307 = vpop.f32.mrf.mxu0
    %1308 = vdwg.mxu0
    %1309 = vmatprep.subr.bf16.mxu0 0
    %1310 = vmatpush1.bf16.xpose.msra.mxu0 0
    %1311 = vmatprep.subr.bf16.mxu0 0
    %1312 = vmatpush1.bf16.xpose.msra.mxu0 0
    %1313 = vmatprep.subr.bf16.mxu0 0
    %1314 = vmatpush1.bf16.xpose.msra.mxu0 0
    %1315 = vmatprep.subr.bf16.mxu0 0
    %1316 = vmatpush1.bf16.xpose.msra.mxu0 0
    %1317 = vmatprep.subr.bf16.mxu0 0
    %1318 = vmatpush1.bf16.xpose.msra.mxu0 0
    %1319 = vmatprep.subr.bf16.mxu0 0
    %1320 = vmatpush1.bf16.xpose.msra.mxu0 0
    %1321 = vmatprep.subr.bf16.mxu0 0
    %1322 = vmatpush1.bf16.xpose.msra.mxu0 0
    %1323 = vmatprep.subr.bf16.mxu0 %v868
    %1324 = vmatpush1.bf16.xpose.msra.mxu0 %v867
    %1325 = vmatprep.subr.bf16.mxu0 0
    %1326 = vmatpush2.bf16.xpose.msra.mxu0 0
    %1327 = vmatprep.subr.bf16.mxu0 0
    %1328 = vmatpush2.bf16.xpose.msra.mxu0 0
    %1329 = vmatprep.subr.bf16.mxu0 0
    %1330 = vmatpush2.bf16.xpose.msra.mxu0 0
    %1331 = vmatprep.subr.bf16.mxu0 0
    %1332 = vmatpush2.bf16.xpose.msra.mxu0 0
    %1333 = vmatprep.subr.bf16.mxu0 0
    %1334 = vmatpush2.bf16.xpose.msra.mxu0 0
    %1335 = vmatprep.subr.bf16.mxu0 0
    %1336 = vmatpush2.bf16.xpose.msra.mxu0 0
    %1337 = vmatprep.subr.bf16.mxu0 0
    %1338 = vmatpush2.bf16.xpose.msra.mxu0 0
    %1339 = vmatprep.subr.bf16.mxu0 0
    %1340 = vmatpush2.bf16.xpose.msra.mxu0 0
    %1341 = vmatprep.mubr.bf16.mxu0 %v596
    %1342 = vmatmul.mubr.bf16.gmra.mxu0 %v594
    %v1343 = vpop.f32.mrf.mxu0
    %v1344 = vadd.f32 %v1304, %v1343
    %v1345 = vpop.f32.mrf.mxu0
    %v1346 = vpop.f32.mrf.mxu0
    %v1347 = vpop.f32.mrf.mxu0
    %1348 = vdwg.mxu0
    %1349 = vmatprep.subr.bf16.mxu0 0
    %1350 = vmatpush1.bf16.xpose.msra.mxu0 0
    %1351 = vmatprep.subr.bf16.mxu0 0
    %1352 = vmatpush1.bf16.xpose.msra.mxu0 0
    %1353 = vmatprep.subr.bf16.mxu0 0
    %1354 = vmatpush1.bf16.xpose.msra.mxu0 0
    %1355 = vmatprep.subr.bf16.mxu0 0
    %1356 = vmatpush1.bf16.xpose.msra.mxu0 0
    %1357 = vmatprep.subr.bf16.mxu0 0
    %1358 = vmatpush1.bf16.xpose.msra.mxu0 0
    %1359 = vmatprep.subr.bf16.mxu0 0
    %1360 = vmatpush1.bf16.xpose.msra.mxu0 0
    %1361 = vmatprep.subr.bf16.mxu0 0
    %1362 = vmatpush1.bf16.xpose.msra.mxu0 0
    %1363 = vmatprep.subr.bf16.mxu0 %v870
    %1364 = vmatpush1.bf16.xpose.msra.mxu0 %v869
    %1365 = vmatprep.subr.bf16.mxu0 0
    %1366 = vmatpush2.bf16.xpose.msra.mxu0 0
    %1367 = vmatprep.subr.bf16.mxu0 0
    %1368 = vmatpush2.bf16.xpose.msra.mxu0 0
    %1369 = vmatprep.subr.bf16.mxu0 0
    %1370 = vmatpush2.bf16.xpose.msra.mxu0 0
    %1371 = vmatprep.subr.bf16.mxu0 0
    %1372 = vmatpush2.bf16.xpose.msra.mxu0 0
    %1373 = vmatprep.subr.bf16.mxu0 0
    %1374 = vmatpush2.bf16.xpose.msra.mxu0 0
    %1375 = vmatprep.subr.bf16.mxu0 0
    %1376 = vmatpush2.bf16.xpose.msra.mxu0 0
    %1377 = vmatprep.subr.bf16.mxu0 0
    %1378 = vmatpush2.bf16.xpose.msra.mxu0 0
    %1379 = vmatprep.subr.bf16.mxu0 0
    %1380 = vmatpush2.bf16.xpose.msra.mxu0 0
    %1381 = vmatprep.mubr.bf16.mxu0 %v612
    %1382 = vmatmul.mubr.bf16.gmra.mxu0 %v604
    %v1383 = vpop.f32.mrf.mxu0
    %v1384 = vadd.f32 %v1344, %v1383
    %v1385 = vpop.f32.mrf.mxu0
    %v1386 = vpop.f32.mrf.mxu0
    %v1387 = vpop.f32.mrf.mxu0
    %1388 = vdwg.mxu0
    %1389 = vmatprep.subr.bf16.mxu0 0
    %1390 = vmatpush1.bf16.xpose.msra.mxu0 0
    %1391 = vmatprep.subr.bf16.mxu0 0
    %1392 = vmatpush1.bf16.xpose.msra.mxu0 0
    %1393 = vmatprep.subr.bf16.mxu0 0
    %1394 = vmatpush1.bf16.xpose.msra.mxu0 0
    %1395 = vmatprep.subr.bf16.mxu0 0
    %1396 = vmatpush1.bf16.xpose.msra.mxu0 0
    %1397 = vmatprep.subr.bf16.mxu0 0
    %1398 = vmatpush1.bf16.xpose.msra.mxu0 0
    %1399 = vmatprep.subr.bf16.mxu0 0
    %1400 = vmatpush1.bf16.xpose.msra.mxu0 0
    %1401 = vmatprep.subr.bf16.mxu0 0
    %1402 = vmatpush1.bf16.xpose.msra.mxu0 0
    %1403 = vmatprep.subr.bf16.mxu0 %v872
    %1404 = vmatpush1.bf16.xpose.msra.mxu0 %v871
    %1405 = vmatprep.subr.bf16.mxu0 0
    %1406 = vmatpush2.bf16.xpose.msra.mxu0 0
    %1407 = vmatprep.subr.bf16.mxu0 0
    %1408 = vmatpush2.bf16.xpose.msra.mxu0 0
    %1409 = vmatprep.subr.bf16.mxu0 0
    %1410 = vmatpush2.bf16.xpose.msra.mxu0 0
    %1411 = vmatprep.subr.bf16.mxu0 0
    %1412 = vmatpush2.bf16.xpose.msra.mxu0 0
    %1413 = vmatprep.subr.bf16.mxu0 0
    %1414 = vmatpush2.bf16.xpose.msra.mxu0 0
    %1415 = vmatprep.subr.bf16.mxu0 0
    %1416 = vmatpush2.bf16.xpose.msra.mxu0 0
    %1417 = vmatprep.subr.bf16.mxu0 0
    %1418 = vmatpush2.bf16.xpose.msra.mxu0 0
    %1419 = vmatprep.subr.bf16.mxu0 0
    %1420 = vmatpush2.bf16.xpose.msra.mxu0 0
    %1421 = vmatprep.mubr.bf16.mxu0 %v613
    %1422 = vmatmul.mubr.bf16.gmra.mxu0 %v611
    %v1423 = vpop.f32.mrf.mxu0
    %v1424 = vadd.f32 %v1384, %v1423
    %v1425 = vpop.f32.mrf.mxu0
    %v1426 = vpop.f32.mrf.mxu0
    %v1427 = vpop.f32.mrf.mxu0
    %1428 = vdwg.mxu0
    %1429 = vmatprep.subr.bf16.mxu0 0
    %1430 = vmatpush1.bf16.xpose.msra.mxu0 0
    %1431 = vmatprep.subr.bf16.mxu0 0
    %1432 = vmatpush1.bf16.xpose.msra.mxu0 0
    %1433 = vmatprep.subr.bf16.mxu0 0
    %1434 = vmatpush1.bf16.xpose.msra.mxu0 0
    %1435 = vmatprep.subr.bf16.mxu0 0
    %1436 = vmatpush1.bf16.xpose.msra.mxu0 0
    %1437 = vmatprep.subr.bf16.mxu0 0
    %1438 = vmatpush1.bf16.xpose.msra.mxu0 0
    %1439 = vmatprep.subr.bf16.mxu0 0
    %1440 = vmatpush1.bf16.xpose.msra.mxu0 0
    %1441 = vmatprep.subr.bf16.mxu0 0
    %1442 = vmatpush1.bf16.xpose.msra.mxu0 0
    %1443 = vmatprep.subr.bf16.mxu0 %v874
    %1444 = vmatpush1.bf16.xpose.msra.mxu0 %v873
    %1445 = vmatprep.subr.bf16.mxu0 0
    %1446 = vmatpush2.bf16.xpose.msra.mxu0 0
    %1447 = vmatprep.subr.bf16.mxu0 0
    %1448 = vmatpush2.bf16.xpose.msra.mxu0 0
    %1449 = vmatprep.subr.bf16.mxu0 0
    %1450 = vmatpush2.bf16.xpose.msra.mxu0 0
    %1451 = vmatprep.subr.bf16.mxu0 0
    %1452 = vmatpush2.bf16.xpose.msra.mxu0 0
    %1453 = vmatprep.subr.bf16.mxu0 0
    %1454 = vmatpush2.bf16.xpose.msra.mxu0 0
    %1455 = vmatprep.subr.bf16.mxu0 0
    %1456 = vmatpush2.bf16.xpose.msra.mxu0 0
    %1457 = vmatprep.subr.bf16.mxu0 0
    %1458 = vmatpush2.bf16.xpose.msra.mxu0 0
    %1459 = vmatprep.subr.bf16.mxu0 0
    %1460 = vmatpush2.bf16.xpose.msra.mxu0 0
    %1461 = vmatprep.mubr.bf16.mxu0 %v629
    %1462 = vmatmul.mubr.bf16.gmra.mxu0 %v621
    %v1463 = vpop.f32.mrf.mxu0
    %v1464 = vadd.f32 %v1424, %v1463
    %v1465 = vpop.f32.mrf.mxu0
    %v1466 = vpop.f32.mrf.mxu0
    %v1467 = vpop.f32.mrf.mxu0
    %1468 = vdwg.mxu0
    %1469 = vmatprep.subr.bf16.mxu0 0
    %1470 = vmatpush1.bf16.xpose.msra.mxu0 0
    %1471 = vmatprep.subr.bf16.mxu0 0
    %1472 = vmatpush1.bf16.xpose.msra.mxu0 0
    %1473 = vmatprep.subr.bf16.mxu0 0
    %1474 = vmatpush1.bf16.xpose.msra.mxu0 0
    %1475 = vmatprep.subr.bf16.mxu0 0
    %1476 = vmatpush1.bf16.xpose.msra.mxu0 0
    %1477 = vmatprep.subr.bf16.mxu0 0
    %1478 = vmatpush1.bf16.xpose.msra.mxu0 0
    %1479 = vmatprep.subr.bf16.mxu0 0
    %1480 = vmatpush1.bf16.xpose.msra.mxu0 0
    %1481 = vmatprep.subr.bf16.mxu0 0
    %1482 = vmatpush1.bf16.xpose.msra.mxu0 0
    %1483 = vmatprep.subr.bf16.mxu0 %v876
    %1484 = vmatpush1.bf16.xpose.msra.mxu0 %v875
    %1485 = vmatprep.subr.bf16.mxu0 0
    %1486 = vmatpush2.bf16.xpose.msra.mxu0 0
    %1487 = vmatprep.subr.bf16.mxu0 0
    %1488 = vmatpush2.bf16.xpose.msra.mxu0 0
    %1489 = vmatprep.subr.bf16.mxu0 0
    %1490 = vmatpush2.bf16.xpose.msra.mxu0 0
    %1491 = vmatprep.subr.bf16.mxu0 0
    %1492 = vmatpush2.bf16.xpose.msra.mxu0 0
    %1493 = vmatprep.subr.bf16.mxu0 0
    %1494 = vmatpush2.bf16.xpose.msra.mxu0 0
    %1495 = vmatprep.subr.bf16.mxu0 0
    %1496 = vmatpush2.bf16.xpose.msra.mxu0 0
    %1497 = vmatprep.subr.bf16.mxu0 0
    %1498 = vmatpush2.bf16.xpose.msra.mxu0 0
    %1499 = vmatprep.subr.bf16.mxu0 0
    %1500 = vmatpush2.bf16.xpose.msra.mxu0 0
    %1501 = vmatprep.mubr.bf16.mxu0 %v630
    %1502 = vmatmul.mubr.bf16.gmra.mxu0 %v628
    %v1503 = vpop.f32.mrf.mxu0
    %v1504 = vadd.f32 %v1464, %v1503
    %v1505 = vpop.f32.mrf.mxu0
    %v1506 = vpop.f32.mrf.mxu0
    %v1507 = vpop.f32.mrf.mxu0
    %1508 = vdwg.mxu0
    %1509 = vmatprep.subr.bf16.mxu0 0
    %1510 = vmatpush1.bf16.xpose.msra.mxu0 0
    %1511 = vmatprep.subr.bf16.mxu0 0
    %1512 = vmatpush1.bf16.xpose.msra.mxu0 0
    %1513 = vmatprep.subr.bf16.mxu0 0
    %1514 = vmatpush1.bf16.xpose.msra.mxu0 0
    %1515 = vmatprep.subr.bf16.mxu0 0
    %1516 = vmatpush1.bf16.xpose.msra.mxu0 0
    %1517 = vmatprep.subr.bf16.mxu0 0
    %1518 = vmatpush1.bf16.xpose.msra.mxu0 0
    %1519 = vmatprep.subr.bf16.mxu0 0
    %1520 = vmatpush1.bf16.xpose.msra.mxu0 0
    %1521 = vmatprep.subr.bf16.mxu0 0
    %1522 = vmatpush1.bf16.xpose.msra.mxu0 0
    %1523 = vmatprep.subr.bf16.mxu0 %v878
    %1524 = vmatpush1.bf16.xpose.msra.mxu0 %v877
    %1525 = vmatprep.subr.bf16.mxu0 0
    %1526 = vmatpush2.bf16.xpose.msra.mxu0 0
    %1527 = vmatprep.subr.bf16.mxu0 0
    %1528 = vmatpush2.bf16.xpose.msra.mxu0 0
    %1529 = vmatprep.subr.bf16.mxu0 0
    %1530 = vmatpush2.bf16.xpose.msra.mxu0 0
    %1531 = vmatprep.subr.bf16.mxu0 0
    %1532 = vmatpush2.bf16.xpose.msra.mxu0 0
    %1533 = vmatprep.subr.bf16.mxu0 0
    %1534 = vmatpush2.bf16.xpose.msra.mxu0 0
    %1535 = vmatprep.subr.bf16.mxu0 0
    %1536 = vmatpush2.bf16.xpose.msra.mxu0 0
    %1537 = vmatprep.subr.bf16.mxu0 0
    %1538 = vmatpush2.bf16.xpose.msra.mxu0 0
    %1539 = vmatprep.subr.bf16.mxu0 0
    %1540 = vmatpush2.bf16.xpose.msra.mxu0 0
    %1541 = vmatprep.mubr.bf16.mxu0 %v646
    %1542 = vmatmul.mubr.bf16.gmra.mxu0 %v638
    %v1543 = vpop.f32.mrf.mxu0
    %v1544 = vadd.f32 %v1504, %v1543
    %v1545 = vpop.f32.mrf.mxu0
    %v1546 = vpop.f32.mrf.mxu0
    %v1547 = vpop.f32.mrf.mxu0
    %1548 = vdwg.mxu0
    %1549 = vmatprep.subr.bf16.mxu0 0
    %1550 = vmatpush1.bf16.xpose.msra.mxu0 0
    %1551 = vmatprep.subr.bf16.mxu0 0
    %1552 = vmatpush1.bf16.xpose.msra.mxu0 0
    %1553 = vmatprep.subr.bf16.mxu0 0
    %1554 = vmatpush1.bf16.xpose.msra.mxu0 0
    %1555 = vmatprep.subr.bf16.mxu0 0
    %1556 = vmatpush1.bf16.xpose.msra.mxu0 0
    %1557 = vmatprep.subr.bf16.mxu0 0
    %1558 = vmatpush1.bf16.xpose.msra.mxu0 0
    %1559 = vmatprep.subr.bf16.mxu0 0
    %1560 = vmatpush1.bf16.xpose.msra.mxu0 0
    %1561 = vmatprep.subr.bf16.mxu0 0
    %1562 = vmatpush1.bf16.xpose.msra.mxu0 0
    %1563 = vmatprep.subr.bf16.mxu0 %v880
    %1564 = vmatpush1.bf16.xpose.msra.mxu0 %v879
    %1565 = vmatprep.subr.bf16.mxu0 0
    %1566 = vmatpush2.bf16.xpose.msra.mxu0 0
    %1567 = vmatprep.subr.bf16.mxu0 0
    %1568 = vmatpush2.bf16.xpose.msra.mxu0 0
    %1569 = vmatprep.subr.bf16.mxu0 0
    %1570 = vmatpush2.bf16.xpose.msra.mxu0 0
    %1571 = vmatprep.subr.bf16.mxu0 0
    %1572 = vmatpush2.bf16.xpose.msra.mxu0 0
    %1573 = vmatprep.subr.bf16.mxu0 0
    %1574 = vmatpush2.bf16.xpose.msra.mxu0 0
    %1575 = vmatprep.subr.bf16.mxu0 0
    %1576 = vmatpush2.bf16.xpose.msra.mxu0 0
    %1577 = vmatprep.subr.bf16.mxu0 0
    %1578 = vmatpush2.bf16.xpose.msra.mxu0 0
    %1579 = vmatprep.subr.bf16.mxu0 0
    %1580 = vmatpush2.bf16.xpose.msra.mxu0 0
    %1581 = vmatprep.mubr.bf16.mxu0 %v647
    %1582 = vmatmul.mubr.bf16.gmra.mxu0 %v645
    %v1583 = vpop.f32.mrf.mxu0
    %v1584 = vadd.f32 %v1544, %v1583
    %v1585 = vpop.f32.mrf.mxu0
    %v1586 = vpop.f32.mrf.mxu0
    %v1587 = vpop.f32.mrf.mxu0
    %1588 = vdwg.mxu0
    %1589 = vmatprep.subr.bf16.mxu0 0
    %1590 = vmatpush1.bf16.xpose.msra.mxu0 0
    %1591 = vmatprep.subr.bf16.mxu0 0
    %1592 = vmatpush1.bf16.xpose.msra.mxu0 0
    %1593 = vmatprep.subr.bf16.mxu0 0
    %1594 = vmatpush1.bf16.xpose.msra.mxu0 0
    %1595 = vmatprep.subr.bf16.mxu0 0
    %1596 = vmatpush1.bf16.xpose.msra.mxu0 0
    %1597 = vmatprep.subr.bf16.mxu0 0
    %1598 = vmatpush1.bf16.xpose.msra.mxu0 0
    %1599 = vmatprep.subr.bf16.mxu0 0
    %1600 = vmatpush1.bf16.xpose.msra.mxu0 0
    %1601 = vmatprep.subr.bf16.mxu0 0
    %1602 = vmatpush1.bf16.xpose.msra.mxu0 0
    %1603 = vmatprep.subr.bf16.mxu0 %v882
    %1604 = vmatpush1.bf16.xpose.msra.mxu0 %v881
    %1605 = vmatprep.subr.bf16.mxu0 0
    %1606 = vmatpush2.bf16.xpose.msra.mxu0 0
    %1607 = vmatprep.subr.bf16.mxu0 0
    %1608 = vmatpush2.bf16.xpose.msra.mxu0 0
    %1609 = vmatprep.subr.bf16.mxu0 0
    %1610 = vmatpush2.bf16.xpose.msra.mxu0 0
    %1611 = vmatprep.subr.bf16.mxu0 0
    %1612 = vmatpush2.bf16.xpose.msra.mxu0 0
    %1613 = vmatprep.subr.bf16.mxu0 0
    %1614 = vmatpush2.bf16.xpose.msra.mxu0 0
    %1615 = vmatprep.subr.bf16.mxu0 0
    %1616 = vmatpush2.bf16.xpose.msra.mxu0 0
    %1617 = vmatprep.subr.bf16.mxu0 0
    %1618 = vmatpush2.bf16.xpose.msra.mxu0 0
    %1619 = vmatprep.subr.bf16.mxu0 0
    %1620 = vmatpush2.bf16.xpose.msra.mxu0 0
    %1621 = vmatprep.mubr.bf16.mxu0 %v663
    %1622 = vmatmul.mubr.bf16.gmra.mxu0 %v655
    %v1623 = vpop.f32.mrf.mxu0
    %v1624 = vadd.f32 %v1584, %v1623
    %v1625 = vpop.f32.mrf.mxu0
    %v1626 = vpop.f32.mrf.mxu0
    %v1627 = vpop.f32.mrf.mxu0
    %1628 = vdwg.mxu0
    %1629 = vmatprep.subr.bf16.mxu0 0
    %1630 = vmatpush1.bf16.xpose.msra.mxu0 0
    %1631 = vmatprep.subr.bf16.mxu0 0
    %1632 = vmatpush1.bf16.xpose.msra.mxu0 0
    %1633 = vmatprep.subr.bf16.mxu0 0
    %1634 = vmatpush1.bf16.xpose.msra.mxu0 0
    %1635 = vmatprep.subr.bf16.mxu0 0
    %1636 = vmatpush1.bf16.xpose.msra.mxu0 0
    %1637 = vmatprep.subr.bf16.mxu0 0
    %1638 = vmatpush1.bf16.xpose.msra.mxu0 0
    %1639 = vmatprep.subr.bf16.mxu0 0
    %1640 = vmatpush1.bf16.xpose.msra.mxu0 0
    %1641 = vmatprep.subr.bf16.mxu0 0
    %1642 = vmatpush1.bf16.xpose.msra.mxu0 0
    %1643 = vmatprep.subr.bf16.mxu0 %v884
    %1644 = vmatpush1.bf16.xpose.msra.mxu0 %v883
    %1645 = vmatprep.subr.bf16.mxu0 0
    %1646 = vmatpush2.bf16.xpose.msra.mxu0 0
    %1647 = vmatprep.subr.bf16.mxu0 0
    %1648 = vmatpush2.bf16.xpose.msra.mxu0 0
    %1649 = vmatprep.subr.bf16.mxu0 0
    %1650 = vmatpush2.bf16.xpose.msra.mxu0 0
    %1651 = vmatprep.subr.bf16.mxu0 0
    %1652 = vmatpush2.bf16.xpose.msra.mxu0 0
    %1653 = vmatprep.subr.bf16.mxu0 0
    %1654 = vmatpush2.bf16.xpose.msra.mxu0 0
    %1655 = vmatprep.subr.bf16.mxu0 0
    %1656 = vmatpush2.bf16.xpose.msra.mxu0 0
    %1657 = vmatprep.subr.bf16.mxu0 0
    %1658 = vmatpush2.bf16.xpose.msra.mxu0 0
    %1659 = vmatprep.subr.bf16.mxu0 0
    %1660 = vmatpush2.bf16.xpose.msra.mxu0 0
    %1661 = vmatprep.mubr.bf16.mxu0 %v664
    %1662 = vmatmul.mubr.bf16.gmra.mxu0 %v662
    %v1663 = vpop.f32.mrf.mxu0
    %v1664 = vadd.f32 %v1624, %v1663
    %v1665 = vpop.f32.mrf.mxu0
    %v1666 = vpop.f32.mrf.mxu0
    %v1667 = vpop.f32.mrf.mxu0
    %1668 = vdwg.mxu0
    %1669 = vmatprep.subr.bf16.mxu0 0
    %1670 = vmatpush1.bf16.xpose.msra.mxu0 0
    %1671 = vmatprep.subr.bf16.mxu0 0
    %1672 = vmatpush1.bf16.xpose.msra.mxu0 0
    %1673 = vmatprep.subr.bf16.mxu0 0
    %1674 = vmatpush1.bf16.xpose.msra.mxu0 0
    %1675 = vmatprep.subr.bf16.mxu0 0
    %1676 = vmatpush1.bf16.xpose.msra.mxu0 0
    %1677 = vmatprep.subr.bf16.mxu0 0
    %1678 = vmatpush1.bf16.xpose.msra.mxu0 0
    %1679 = vmatprep.subr.bf16.mxu0 0
    %1680 = vmatpush1.bf16.xpose.msra.mxu0 0
    %1681 = vmatprep.subr.bf16.mxu0 0
    %1682 = vmatpush1.bf16.xpose.msra.mxu0 0
    %1683 = vmatprep.subr.bf16.mxu0 %v886
    %1684 = vmatpush1.bf16.xpose.msra.mxu0 %v885
    %1685 = vmatprep.subr.bf16.mxu0 0
    %1686 = vmatpush2.bf16.xpose.msra.mxu0 0
    %1687 = vmatprep.subr.bf16.mxu0 0
    %1688 = vmatpush2.bf16.xpose.msra.mxu0 0
    %1689 = vmatprep.subr.bf16.mxu0 0
    %1690 = vmatpush2.bf16.xpose.msra.mxu0 0
    %1691 = vmatprep.subr.bf16.mxu0 0
    %1692 = vmatpush2.bf16.xpose.msra.mxu0 0
    %1693 = vmatprep.subr.bf16.mxu0 0
    %1694 = vmatpush2.bf16.xpose.msra.mxu0 0
    %1695 = vmatprep.subr.bf16.mxu0 0
    %1696 = vmatpush2.bf16.xpose.msra.mxu0 0
    %1697 = vmatprep.subr.bf16.mxu0 0
    %1698 = vmatpush2.bf16.xpose.msra.mxu0 0
    %1699 = vmatprep.subr.bf16.mxu0 0
    %1700 = vmatpush2.bf16.xpose.msra.mxu0 0
    %1701 = vmatprep.mubr.bf16.mxu0 %v680
    %1702 = vmatmul.mubr.bf16.gmra.mxu0 %v672
    %v1703 = vpop.f32.mrf.mxu0
    %v1704 = vadd.f32 %v1664, %v1703
    %v1705 = vpop.f32.mrf.mxu0
    %v1706 = vpop.f32.mrf.mxu0
    %v1707 = vpop.f32.mrf.mxu0
    %1708 = vdwg.mxu0
    %1709 = vmatprep.subr.bf16.mxu0 0
    %1710 = vmatpush1.bf16.xpose.msra.mxu0 0
    %1711 = vmatprep.subr.bf16.mxu0 0
    %1712 = vmatpush1.bf16.xpose.msra.mxu0 0
    %1713 = vmatprep.subr.bf16.mxu0 0
    %1714 = vmatpush1.bf16.xpose.msra.mxu0 0
    %1715 = vmatprep.subr.bf16.mxu0 0
    %1716 = vmatpush1.bf16.xpose.msra.mxu0 0
    %1717 = vmatprep.subr.bf16.mxu0 0
    %1718 = vmatpush1.bf16.xpose.msra.mxu0 0
    %1719 = vmatprep.subr.bf16.mxu0 0
    %1720 = vmatpush1.bf16.xpose.msra.mxu0 0
    %1721 = vmatprep.subr.bf16.mxu0 0
    %1722 = vmatpush1.bf16.xpose.msra.mxu0 0
    %1723 = vmatprep.subr.bf16.mxu0 %v888
    %1724 = vmatpush1.bf16.xpose.msra.mxu0 %v887
    %1725 = vmatprep.subr.bf16.mxu0 0
    %1726 = vmatpush2.bf16.xpose.msra.mxu0 0
    %1727 = vmatprep.subr.bf16.mxu0 0
    %1728 = vmatpush2.bf16.xpose.msra.mxu0 0
    %1729 = vmatprep.subr.bf16.mxu0 0
    %1730 = vmatpush2.bf16.xpose.msra.mxu0 0
    %1731 = vmatprep.subr.bf16.mxu0 0
    %1732 = vmatpush2.bf16.xpose.msra.mxu0 0
    %1733 = vmatprep.subr.bf16.mxu0 0
    %1734 = vmatpush2.bf16.xpose.msra.mxu0 0
    %1735 = vmatprep.subr.bf16.mxu0 0
    %1736 = vmatpush2.bf16.xpose.msra.mxu0 0
    %1737 = vmatprep.subr.bf16.mxu0 0
    %1738 = vmatpush2.bf16.xpose.msra.mxu0 0
    %1739 = vmatprep.subr.bf16.mxu0 0
    %1740 = vmatpush2.bf16.xpose.msra.mxu0 0
    %1741 = vmatprep.mubr.bf16.mxu0 %v681
    %1742 = vmatmul.mubr.bf16.gmra.mxu0 %v679
    %v1743 = vpop.f32.mrf.mxu0
    %v1744 = vadd.f32 %v1704, %v1743
    %v1745 = vpop.f32.mrf.mxu0
    %v1746 = vpop.f32.mrf.mxu0
    %v1747 = vpop.f32.mrf.mxu0
    %1748 = vdwg.mxu0
    %1749 = vmatprep.subr.bf16.mxu0 0
    %1750 = vmatpush1.bf16.xpose.msra.mxu0 0
    %1751 = vmatprep.subr.bf16.mxu0 0
    %1752 = vmatpush1.bf16.xpose.msra.mxu0 0
    %1753 = vmatprep.subr.bf16.mxu0 0
    %1754 = vmatpush1.bf16.xpose.msra.mxu0 0
    %1755 = vmatprep.subr.bf16.mxu0 0
    %1756 = vmatpush1.bf16.xpose.msra.mxu0 0
    %1757 = vmatprep.subr.bf16.mxu0 0
    %1758 = vmatpush1.bf16.xpose.msra.mxu0 0
    %1759 = vmatprep.subr.bf16.mxu0 0
    %1760 = vmatpush1.bf16.xpose.msra.mxu0 0
    %1761 = vmatprep.subr.bf16.mxu0 0
    %1762 = vmatpush1.bf16.xpose.msra.mxu0 0
    %1763 = vmatprep.subr.bf16.mxu0 %v890
    %1764 = vmatpush1.bf16.xpose.msra.mxu0 %v889
    %1765 = vmatprep.subr.bf16.mxu0 0
    %1766 = vmatpush2.bf16.xpose.msra.mxu0 0
    %1767 = vmatprep.subr.bf16.mxu0 0
    %1768 = vmatpush2.bf16.xpose.msra.mxu0 0
    %1769 = vmatprep.subr.bf16.mxu0 0
    %1770 = vmatpush2.bf16.xpose.msra.mxu0 0
    %1771 = vmatprep.subr.bf16.mxu0 0
    %1772 = vmatpush2.bf16.xpose.msra.mxu0 0
    %1773 = vmatprep.subr.bf16.mxu0 0
    %1774 = vmatpush2.bf16.xpose.msra.mxu0 0
    %1775 = vmatprep.subr.bf16.mxu0 0
    %1776 = vmatpush2.bf16.xpose.msra.mxu0 0
    %1777 = vmatprep.subr.bf16.mxu0 0
    %1778 = vmatpush2.bf16.xpose.msra.mxu0 0
    %1779 = vmatprep.subr.bf16.mxu0 0
    %1780 = vmatpush2.bf16.xpose.msra.mxu0 0
    %1781 = vmatprep.mubr.bf16.mxu0 %v697
    %1782 = vmatmul.mubr.bf16.gmra.mxu0 %v689
    %v1783 = vpop.f32.mrf.mxu0
    %v1784 = vadd.f32 %v1744, %v1783
    %v1785 = vpop.f32.mrf.mxu0
    %v1786 = vpop.f32.mrf.mxu0
    %v1787 = vpop.f32.mrf.mxu0
    %1788 = vdwg.mxu0
    %1789 = vmatprep.subr.bf16.mxu0 0
    %1790 = vmatpush1.bf16.xpose.msra.mxu0 0
    %1791 = vmatprep.subr.bf16.mxu0 0
    %1792 = vmatpush1.bf16.xpose.msra.mxu0 0
    %1793 = vmatprep.subr.bf16.mxu0 0
    %1794 = vmatpush1.bf16.xpose.msra.mxu0 0
    %1795 = vmatprep.subr.bf16.mxu0 0
    %1796 = vmatpush1.bf16.xpose.msra.mxu0 0
    %1797 = vmatprep.subr.bf16.mxu0 0
    %1798 = vmatpush1.bf16.xpose.msra.mxu0 0
    %1799 = vmatprep.subr.bf16.mxu0 0
    %1800 = vmatpush1.bf16.xpose.msra.mxu0 0
    %1801 = vmatprep.subr.bf16.mxu0 0
    %1802 = vmatpush1.bf16.xpose.msra.mxu0 0
    %1803 = vmatprep.subr.bf16.mxu0 %v892
    %1804 = vmatpush1.bf16.xpose.msra.mxu0 %v891
    %1805 = vmatprep.subr.bf16.mxu0 0
    %1806 = vmatpush2.bf16.xpose.msra.mxu0 0
    %1807 = vmatprep.subr.bf16.mxu0 0
    %1808 = vmatpush2.bf16.xpose.msra.mxu0 0
    %1809 = vmatprep.subr.bf16.mxu0 0
    %1810 = vmatpush2.bf16.xpose.msra.mxu0 0
    %1811 = vmatprep.subr.bf16.mxu0 0
    %1812 = vmatpush2.bf16.xpose.msra.mxu0 0
    %1813 = vmatprep.subr.bf16.mxu0 0
    %1814 = vmatpush2.bf16.xpose.msra.mxu0 0
    %1815 = vmatprep.subr.bf16.mxu0 0
    %1816 = vmatpush2.bf16.xpose.msra.mxu0 0
    %1817 = vmatprep.subr.bf16.mxu0 0
    %1818 = vmatpush2.bf16.xpose.msra.mxu0 0
    %1819 = vmatprep.subr.bf16.mxu0 0
    %1820 = vmatpush2.bf16.xpose.msra.mxu0 0
    %1821 = vmatprep.mubr.bf16.mxu0 %v698
    %1822 = vmatmul.mubr.bf16.gmra.mxu0 %v696
    %v1823 = vpop.f32.mrf.mxu0
    %v1824 = vadd.f32 %v1784, %v1823
    %v1825 = vpop.f32.mrf.mxu0
    %v1826 = vpop.f32.mrf.mxu0
    %v1827 = vpop.f32.mrf.mxu0
    %1828 = vdwg.mxu0
    %1829 = vmatprep.subr.bf16.mxu0 0
    %1830 = vmatpush1.bf16.xpose.msra.mxu0 0
    %1831 = vmatprep.subr.bf16.mxu0 0
    %1832 = vmatpush1.bf16.xpose.msra.mxu0 0
    %1833 = vmatprep.subr.bf16.mxu0 0
    %1834 = vmatpush1.bf16.xpose.msra.mxu0 0
    %1835 = vmatprep.subr.bf16.mxu0 0
    %1836 = vmatpush1.bf16.xpose.msra.mxu0 0
    %1837 = vmatprep.subr.bf16.mxu0 0
    %1838 = vmatpush1.bf16.xpose.msra.mxu0 0
    %1839 = vmatprep.subr.bf16.mxu0 0
    %1840 = vmatpush1.bf16.xpose.msra.mxu0 0
    %1841 = vmatprep.subr.bf16.mxu0 0
    %1842 = vmatpush1.bf16.xpose.msra.mxu0 0
    %1843 = vmatprep.subr.bf16.mxu0 %v894
    %1844 = vmatpush1.bf16.xpose.msra.mxu0 %v893
    %1845 = vmatprep.subr.bf16.mxu0 0
    %1846 = vmatpush2.bf16.xpose.msra.mxu0 0
    %1847 = vmatprep.subr.bf16.mxu0 0
    %1848 = vmatpush2.bf16.xpose.msra.mxu0 0
    %1849 = vmatprep.subr.bf16.mxu0 0
    %1850 = vmatpush2.bf16.xpose.msra.mxu0 0
    %1851 = vmatprep.subr.bf16.mxu0 0
    %1852 = vmatpush2.bf16.xpose.msra.mxu0 0
    %1853 = vmatprep.subr.bf16.mxu0 0
    %1854 = vmatpush2.bf16.xpose.msra.mxu0 0
    %1855 = vmatprep.subr.bf16.mxu0 0
    %1856 = vmatpush2.bf16.xpose.msra.mxu0 0
    %1857 = vmatprep.subr.bf16.mxu0 0
    %1858 = vmatpush2.bf16.xpose.msra.mxu0 0
    %1859 = vmatprep.subr.bf16.mxu0 0
    %1860 = vmatpush2.bf16.xpose.msra.mxu0 0
    %1861 = vmatprep.mubr.bf16.mxu0 %v714
    %1862 = vmatmul.mubr.bf16.gmra.mxu0 %v706
    %v1863 = vpop.f32.mrf.mxu0
    %v1864 = vadd.f32 %v1824, %v1863
    %v1865 = vpop.f32.mrf.mxu0
    %v1866 = vpop.f32.mrf.mxu0
    %v1867 = vpop.f32.mrf.mxu0
    %1868 = vdwg.mxu0
    %1869 = vmatprep.subr.bf16.mxu0 0
    %1870 = vmatpush1.bf16.xpose.msra.mxu0 0
    %1871 = vmatprep.subr.bf16.mxu0 0
    %1872 = vmatpush1.bf16.xpose.msra.mxu0 0
    %1873 = vmatprep.subr.bf16.mxu0 0
    %1874 = vmatpush1.bf16.xpose.msra.mxu0 0
    %1875 = vmatprep.subr.bf16.mxu0 0
    %1876 = vmatpush1.bf16.xpose.msra.mxu0 0
    %1877 = vmatprep.subr.bf16.mxu0 0
    %1878 = vmatpush1.bf16.xpose.msra.mxu0 0
    %1879 = vmatprep.subr.bf16.mxu0 0
    %1880 = vmatpush1.bf16.xpose.msra.mxu0 0
    %1881 = vmatprep.subr.bf16.mxu0 0
    %1882 = vmatpush1.bf16.xpose.msra.mxu0 0
    %1883 = vmatprep.subr.bf16.mxu0 %v896
    %1884 = vmatpush1.bf16.xpose.msra.mxu0 %v895
    %1885 = vmatprep.subr.bf16.mxu0 0
    %1886 = vmatpush2.bf16.xpose.msra.mxu0 0
    %1887 = vmatprep.subr.bf16.mxu0 0
    %1888 = vmatpush2.bf16.xpose.msra.mxu0 0
    %1889 = vmatprep.subr.bf16.mxu0 0
    %1890 = vmatpush2.bf16.xpose.msra.mxu0 0
    %1891 = vmatprep.subr.bf16.mxu0 0
    %1892 = vmatpush2.bf16.xpose.msra.mxu0 0
    %1893 = vmatprep.subr.bf16.mxu0 0
    %1894 = vmatpush2.bf16.xpose.msra.mxu0 0
    %1895 = vmatprep.subr.bf16.mxu0 0
    %1896 = vmatpush2.bf16.xpose.msra.mxu0 0
    %1897 = vmatprep.subr.bf16.mxu0 0
    %1898 = vmatpush2.bf16.xpose.msra.mxu0 0
    %1899 = vmatprep.subr.bf16.mxu0 0
    %1900 = vmatpush2.bf16.xpose.msra.mxu0 0
    %1901 = vmatprep.mubr.bf16.mxu0 %v715
    %1902 = vmatmul.mubr.bf16.gmra.mxu0 %v713
    %v1903 = vpop.f32.mrf.mxu0
    %v1904 = vadd.f32 %v1864, %v1903
    %v1905 = vpop.f32.mrf.mxu0
    %v1906 = vpop.f32.mrf.mxu0
    %v1907 = vpop.f32.mrf.mxu0
    %1908 = vdwg.mxu0
    %1909 = vmatprep.subr.bf16.mxu0 0
    %1910 = vmatpush1.bf16.xpose.msra.mxu0 0
    %1911 = vmatprep.subr.bf16.mxu0 0
    %1912 = vmatpush1.bf16.xpose.msra.mxu0 0
    %1913 = vmatprep.subr.bf16.mxu0 0
    %1914 = vmatpush1.bf16.xpose.msra.mxu0 0
    %1915 = vmatprep.subr.bf16.mxu0 0
    %1916 = vmatpush1.bf16.xpose.msra.mxu0 0
    %1917 = vmatprep.subr.bf16.mxu0 0
    %1918 = vmatpush1.bf16.xpose.msra.mxu0 0
    %1919 = vmatprep.subr.bf16.mxu0 0
    %1920 = vmatpush1.bf16.xpose.msra.mxu0 0
    %1921 = vmatprep.subr.bf16.mxu0 0
    %1922 = vmatpush1.bf16.xpose.msra.mxu0 0
    %1923 = vmatprep.subr.bf16.mxu0 %v898
    %1924 = vmatpush1.bf16.xpose.msra.mxu0 %v897
    %1925 = vmatprep.subr.bf16.mxu0 0
    %1926 = vmatpush2.bf16.xpose.msra.mxu0 0
    %1927 = vmatprep.subr.bf16.mxu0 0
    %1928 = vmatpush2.bf16.xpose.msra.mxu0 0
    %1929 = vmatprep.subr.bf16.mxu0 0
    %1930 = vmatpush2.bf16.xpose.msra.mxu0 0
    %1931 = vmatprep.subr.bf16.mxu0 0
    %1932 = vmatpush2.bf16.xpose.msra.mxu0 0
    %1933 = vmatprep.subr.bf16.mxu0 0
    %1934 = vmatpush2.bf16.xpose.msra.mxu0 0
    %1935 = vmatprep.subr.bf16.mxu0 0
    %1936 = vmatpush2.bf16.xpose.msra.mxu0 0
    %1937 = vmatprep.subr.bf16.mxu0 0
    %1938 = vmatpush2.bf16.xpose.msra.mxu0 0
    %1939 = vmatprep.subr.bf16.mxu0 0
    %1940 = vmatpush2.bf16.xpose.msra.mxu0 0
    %1941 = vmatprep.mubr.bf16.mxu0 %v723
    %1942 = vmatmul.mubr.bf16.gmra.mxu0 %v722
    %v1943 = vpop.f32.mrf.mxu0
    %v1944 = vadd.f32 %v1904, %v1943
    %v1945 = vpop.f32.mrf.mxu0
    %v1946 = vpop.f32.mrf.mxu0
    %v1947 = vpop.f32.mrf.mxu0
    %1948 = vdwg.mxu0
    %vm1949 = vcmask 44032
    %1950 = vst.msk [vmem:[#allocation9] sm:$0xf] %vm1949, %v1944
    // Predicated region
    $region26: #{logistic_regression_forward.1} parent=1 // pred_check
      _
    $region27: #{logistic_regression_forward.1} parent=1 // pred_check_branch
      %1952 = sbr.rel (0) target = $region29
    $region28: #{logistic_regression_forward.1} parent=1 // pred_region
      %s1954 = ssub.s32 64, 64
      %1955 = vsyncadd [#allocation5], %s1954
      %s1957 = sshll.u32 [#allocation9], 4
      %s1958 = int_to_ptr.vmem [resolvable:$true] %s1957
      %1960 = dma.vmem_to_hbm [thread:$0]  %s1958, 64, %s3, [#allocation5]
    $region29: #{logistic_regression_forward.1} parent=1 // pred_fallthru
      _
    // Predicated region
    $region30: #{logistic_regression_forward.1} parent=1 // pred_check
      _
    $region31: #{logistic_regression_forward.1} parent=1 // pred_check_branch
      %1962 = sbr.rel (0) target = $region33
    $region32: #{logistic_regression_forward.1} parent=1 // pred_region
      %1963 = dma.done [#allocation5], 64
    $region33: #{logistic_regression_forward.1} parent=1 // pred_fallthru
      _
    %1964 = vsyncpa [#allocation4], 1
    %1965 = vsyncpa [#allocation7], 1
    %1966 = vsyncpa [#allocation5], 1

</llo_original>
